<compile_context>
chip_gen: v7x
topology: tpu7x:2x2x1
jax: 0.10.0
libtpu: 0.0.40
codegen_flags: <defaults>
</compile_context>

<pallas_src>
import numpy as np
import jax
import jax.numpy as jnp
from jax.experimental import pallas as pl
from jax.experimental.pallas import tpu as pltpu

BN_EPS = 1e-5
LANES = 128


def _layer_cfgs(input_size, channels, kernels, poolings):
    """Static per-layer bookkeeping (Conv1d stride=1, pad=0; AvgPool floor).

    `dil` is the lane stride at which this layer's *input* samples live inside the
    fixed-width slab (product of all earlier poolings)."""
    cfgs = []
    cin, lin, dil = 1, input_size, 1
    for cout, k, pool in zip(channels, kernels, poolings):
        ol = lin - k + 1             # Conv1d output length (compacted indexing)
        pld = ol // pool             # AvgPool1d output length (floor, drops tail)
        cfgs.append(dict(cin=cin, cout=cout, k=k, lin=lin, ol=ol,
                         pool=pool, pl=pld, dil=dil))
        cin, lin, dil = cout, pld, dil * pool
    return cfgs


def _make_fused_kernel(cfgs, n_batch, w_main, eps):
    """Fused Conv1d -> BN(batch stats) -> ReLU -> AvgPool1d for all layers.

    All activations are (N, W) slabs with W = w_main lanes; layer-i data sits at lane
    positions t = dil_i * j.  All reads are contiguous static lane-offset windows."""
    n_layers = len(cfgs)
    any_pool = any(c["pool"] > 1 for c in cfgs)
    W = w_main

    def kernel(*refs):
        x_ref = refs[0]                                           # (1, N, Wa) VMEM
        layer_params = [refs[1 + 3 * i: 1 + 3 * (i + 1)] for i in range(n_layers)]
        o_ref = refs[1 + 3 * n_layers]                            # (C_last, N, W)
        scratch = refs[2 + 3 * n_layers:]
        h_refs = list(scratch[:n_layers - 1])                     # (C_i, N, Wa) slabs
        stage_ref = scratch[n_layers - 1] if any_pool else None   # (N, Wa) pool staging

        for li, cfg in enumerate(cfgs):
            cin, cout, K = cfg["cin"], cfg["cout"], cfg["k"]
            OL, pool, D = cfg["ol"], cfg["pool"], cfg["dil"]
            w_ref, g_ref, be_ref = layer_params[li]               # SMEM scalars
            src_ref = x_ref if li == 0 else h_refs[li - 1]
            last = li == n_layers - 1
            dst_ref = o_ref if last else h_refs[li]

            # ---- hoisted unique conv taps: one (N, W) contiguous lane window per
            #      (ci, k); reused by every output channel (no cout-fold of reloads).
            # (If cin*K ever grows large, chunk this with lax.fori_loop(unroll=True).)
            taps = [[src_ref[ci, :, D * k: D * k + W] for k in range(K)]
                    for ci in range(cin)]

            # ---- validity mask for BN batch statistics: this layer's conv output is
            #      meaningful only at lanes t = D*j, j < OL.
            t = jax.lax.broadcasted_iota(jnp.int32, (n_batch, W), 1)
            if D == 1:
                valid = t < OL
            elif D & (D - 1) == 0:                                # power-of-two stride
                valid = (t < D * OL) & ((t & (D - 1)) == 0)
            else:
                valid = (t < D * OL) & ((t % D) == 0)
            inv_cnt = 1.0 / float(n_batch * OL)
            inv_pool = 1.0 / float(pool)

            for co in range(cout):
                # ---- Conv1d: K*Cin scalar(SMEM) x full-lane-width VPU FMAs (no MXU).
                #      Bias omitted: exactly cancelled by train-mode BN mean subtraction.
                acc = None
                for ci in range(cin):
                    for k in range(K):
                        w = w_ref[(co * cin + ci) * K + k]
                        term = w * taps[ci][k]
                        acc = term if acc is None else acc + term

                # ---- BatchNorm1d (training): masked single-pass sum / sum-of-squares
                #      folded into one scale/shift.  where()-masking keeps pad-lane NaNs
                #      out of the reductions (macc*macc, never macc*acc).
                macc = jnp.where(valid, acc, 0.0)
                s1 = jnp.sum(macc)
                s2 = jnp.sum(macc * macc)
                mean = s1 * inv_cnt
                var = jnp.maximum(s2 * inv_cnt - mean * mean, 0.0)
                scale = g_ref[co] * jax.lax.rsqrt(var + eps)      # EUP slot
                shift = be_ref[co] - mean * scale
                # ---- normalize + ReLU (one FMA pass + one max pass)
                y = jnp.maximum(acc * scale + shift, 0.0)

                # ---- AvgPool1d(pool): shifted contiguous adds; result stays at lane
                #      stride D*pool (compaction deferred to the wrapper, see module doc)
                if pool == 1:
                    dst_ref[co, :, :W] = y
                else:
                    stage_ref[:, :W] = y
                    psum = y
                    for d in range(1, pool):
                        psum = psum + stage_ref[:, D * d: D * d + W]
                    dst_ref[co, :, :W] = psum * inv_pool

    return kernel


def cae1d_encoder_forward(x, params, *, input_size, poolings):
    """Forward pass matching CAE1D_encoder (fresh module => training-mode BatchNorm)."""
    channels = [p["w"].shape[0] for p in params]
    kernels = [p["w"].shape[-1] for p in params]
    cfgs = _layer_cfgs(input_size, channels, kernels, poolings)

    # Slab width: lane-dense multiple of 128; extra lanes so shifted windows stay in-bounds.
    W = ((input_size + LANES - 1) // LANES) * LANES
    extra = max(max(c["dil"] * (c["k"] - 1), c["dil"] * (c["pool"] - 1)) for c in cfgs)
    Wa = W + extra

    # x.view(-1, 1, input_size); internal layout (Cin=1, N, L): batch on sublanes, L on lanes.
    x2 = x.reshape(-1, input_size).astype(jnp.float32)
    n = x2.shape[0]
    x_pad = jnp.zeros((1, n, Wa), jnp.float32).at[0, :, :input_size].set(x2)

    kernel = _make_fused_kernel(cfgs, n, W, BN_EPS)

    inputs = [x_pad]
    in_specs = [pl.BlockSpec(memory_space=pltpu.MemorySpace.VMEM)]
    for p in params:
        # Conv bias intentionally not passed: it cancels under training-mode BN.
        inputs.append(p["w"].reshape(-1).astype(jnp.float32))
        inputs.append(p["gamma"].astype(jnp.float32))
        inputs.append(p["beta"].astype(jnp.float32))
        in_specs += [pl.BlockSpec(memory_space=pltpu.MemorySpace.SMEM)] * 3

    scratch_shapes = [pltpu.VMEM((c["cout"], n, Wa), jnp.float32) for c in cfgs[:-1]]
    if any(c["pool"] > 1 for c in cfgs):
        scratch_shapes.append(pltpu.VMEM((n, Wa), jnp.float32))

    last = cfgs[-1]
    out_shape = jax.ShapeDtypeStruct((last["cout"], n, W), jnp.float32)

    flops = 0
    for c in cfgs:
        flops += 2 * c["k"] * c["cin"] * c["cout"] * n * W       # conv MACs (dilated width)
        flops += 10 * c["cout"] * n * W                          # mask/BN/ReLU/pool passes
    transcendentals = sum(c["cout"] for c in cfgs)               # one rsqrt per channel
    bytes_accessed = 4 * (x_pad.size + sum(int(a.size) for a in inputs[1:])
                          + last["cout"] * n * W)

    out = pl.pallas_call(
        kernel,
        out_shape=out_shape,
        in_specs=in_specs,
        out_specs=pl.BlockSpec(memory_space=pltpu.MemorySpace.VMEM),
        scratch_shapes=scratch_shapes,
        compiler_params=pltpu.CompilerParams(vmem_limit_bytes=32 * 1024 * 1024),
        cost_estimate=pl.CostEstimate(flops=int(flops),
                                      transcendentals=int(transcendentals),
                                      bytes_accessed=int(bytes_accessed)),
    )(*inputs)

    # Valid features of the last layer live at lane stride prod(poolings).  Gather the
    # PL valid columns and flatten in PyTorch's (N, C, L) channel-major order; this is a
    # <2 KiB slice + transpose fused by XLA (kernel stores stay full-width lane-dense).
    stride = 1
    for p_ in poolings:
        stride *= p_
    feats = out[:, :, ::stride][:, :, :last["pl"]]               # (C_last, N, PL_last)
    return jnp.transpose(feats, (1, 0, 2)).reshape(n, -1)


def init_params(key, channels, kernels):
    """Deterministic PyTorch-like init: Conv1d weight (Cout, Cin, K), U(+-1/sqrt(fan_in))."""
    params = []
    cin = 1
    for cout, k in zip(channels, kernels):
        key, kw, kb = jax.random.split(key, 3)
        bound = 1.0 / np.sqrt(cin * k)
        w = jax.random.uniform(kw, (cout, cin, k), jnp.float32, -bound, bound)
        b = jax.random.uniform(kb, (cout,), jnp.float32, -bound, bound)
        params.append(dict(w=w, b=b,
                           gamma=jnp.ones((cout,), jnp.float32),   # BN affine defaults
                           beta=jnp.zeros((cout,), jnp.float32)))
        cin = cout
    return params


def reference_forward(x, params, *, input_size, poolings):
    """Pure-JAX reference mirroring the PyTorch forward (training-mode BN, with bias)."""
    h = x.reshape(-1, 1, input_size).astype(jnp.float32)
    for p, pool in zip(params, poolings):
        y = jax.lax.conv_general_dilated(
            h, p["w"], window_strides=(1,), padding=[(0, 0)],
            dimension_numbers=("NCH", "OIH", "NCH"),
            precision=jax.lax.Precision.HIGHEST)
        y = y + p["b"].reshape(1, -1, 1)
        mean = jnp.mean(y, axis=(0, 2), keepdims=True)
        var = jnp.mean((y - mean) ** 2, axis=(0, 2), keepdims=True)
        y = (y - mean) * jax.lax.rsqrt(var + BN_EPS) * p["gamma"].reshape(1, -1, 1) \
            + p["beta"].reshape(1, -1, 1)
        y = jnp.maximum(y, 0.0)
        if pool != 1:
            nb, c, L = y.shape
            pl_ = L // pool
            y = y[:, :, :pl_ * pool].reshape(nb, c, pl_, pool).mean(axis=-1)
        h = y
    return h.reshape(h.shape[0], -1)


if __name__ == "__main__":
    # CAE1D_encoder(input_size=128, channels=[4,8], kernels=[3,3], poolings=[2,2])
    input_size = 128
    channels = [4, 8]
    kernels = [3, 3]
    poolings = [2, 2]
    batch = 2

    key = jax.random.PRNGKey(0)
    key, kx = jax.random.split(key)
    x = jax.random.normal(kx, (batch, input_size), jnp.float32)  # viewed as (-1, 1, 128)
    params = init_params(key, channels, kernels)

    out = cae1d_encoder_forward(x, params, input_size=input_size, poolings=poolings)
    out = jax.block_until_ready(out)

    ref = reference_forward(x, params, input_size=input_size, poolings=poolings)
    # lengths: 128 -conv-> 126 -pool-> 63 -conv-> 61 -pool-> 30 ; flatten -> 8*30 = 240
    assert out.shape == (batch, channels[-1] * 30), out.shape
    np.testing.assert_allclose(np.asarray(out), np.asarray(ref), rtol=5e-4, atol=5e-4)
    print("KERNEL_OK")
</pallas_src>

<mosaic_0001>
module attributes {stable_mosaic.version = 11 : i64} {
  func.func @kernel(%arg0: memref<1x2x132xf32, #tpu.memory_space<vmem>>, %arg1: memref<12xf32, #tpu.memory_space<smem>>, %arg2: memref<4xf32, #tpu.memory_space<smem>>, %arg3: memref<4xf32, #tpu.memory_space<smem>>, %arg4: memref<96xf32, #tpu.memory_space<smem>>, %arg5: memref<8xf32, #tpu.memory_space<smem>>, %arg6: memref<8xf32, #tpu.memory_space<smem>>, %arg7: memref<8x2x128xf32, #tpu.memory_space<vmem>>, %arg8: memref<4x2x132xf32, #tpu.memory_space<vmem>>, %arg9: memref<2x132xf32, #tpu.memory_space<vmem>>) attributes {dimension_semantics = [], scalar_prefetch = 0 : i64, scratch_operands = 2 : i64, tpu.core_type = #tpu.core_type<tc>} {
    %c0 = arith.constant 0 : index
    %c0_0 = arith.constant 0 : index
    %c0_1 = arith.constant 0 : index
    %0 = vector.load %arg0[%c0, %c0_0, %c0_1] : memref<1x2x132xf32, #tpu.memory_space<vmem>>, vector<1x2x128xf32>
    %1 = vector.shape_cast %0 : vector<1x2x128xf32> to vector<2x128xf32>
    %c0_2 = arith.constant 0 : index
    %c0_3 = arith.constant 0 : index
    %c1 = arith.constant 1 : index
    %2 = vector.load %arg0[%c0_2, %c0_3, %c1] : memref<1x2x132xf32, #tpu.memory_space<vmem>>, vector<1x2x128xf32>
    %3 = vector.shape_cast %2 : vector<1x2x128xf32> to vector<2x128xf32>
    %c0_4 = arith.constant 0 : index
    %c0_5 = arith.constant 0 : index
    %c2 = arith.constant 2 : index
    %4 = vector.load %arg0[%c0_4, %c0_5, %c2] : memref<1x2x132xf32, #tpu.memory_space<vmem>>, vector<1x2x128xf32>
    %5 = vector.shape_cast %4 : vector<1x2x128xf32> to vector<2x128xf32>
    %6 = tpu.iota {dimensions = array<i32: 1>} : vector<2x128xi32>
    %c126_i32 = arith.constant 126 : i32
    %7 = vector.broadcast %c126_i32 : i32 to vector<2x128xi32>
    %8 = arith.cmpi slt, %6, %7 : vector<2x128xi32>
    %c0_6 = arith.constant 0 : index
    %9 = memref.load %arg1[%c0_6] : memref<12xf32, #tpu.memory_space<smem>>
    %10 = vector.broadcast %9 : f32 to vector<2x128xf32>
    %11 = arith.mulf %10, %1 : vector<2x128xf32>
    %c1_7 = arith.constant 1 : index
    %12 = memref.load %arg1[%c1_7] : memref<12xf32, #tpu.memory_space<smem>>
    %13 = vector.broadcast %12 : f32 to vector<2x128xf32>
    %14 = arith.mulf %13, %3 : vector<2x128xf32>
    %15 = arith.addf %11, %14 : vector<2x128xf32>
    %c2_8 = arith.constant 2 : index
    %16 = memref.load %arg1[%c2_8] : memref<12xf32, #tpu.memory_space<smem>>
    %17 = vector.broadcast %16 : f32 to vector<2x128xf32>
    %18 = arith.mulf %17, %5 : vector<2x128xf32>
    %19 = arith.addf %15, %18 : vector<2x128xf32>
    %cst = arith.constant 0.000000e+00 : f32
    %20 = vector.broadcast %cst : f32 to vector<2x128xf32>
    %21 = arith.select %8, %19, %20 : vector<2x128xi1>, vector<2x128xf32>
    %22 = vector.shape_cast %21 : vector<2x128xf32> to vector<1x2x128xf32>
    %cst_9 = arith.constant dense<0.000000e+00> : vector<1xf32>
    %23 = vector.multi_reduction <add>, %22, %cst_9 [1, 2] : vector<1x2x128xf32> to vector<1xf32>
    %24 = vector.shape_cast %23 : vector<1xf32> to vector<1x1x1xf32>
    %25 = vector.extract %24[0, 0, 0] : f32 from vector<1x1x1xf32>
    %26 = arith.mulf %21, %21 : vector<2x128xf32>
    %27 = vector.shape_cast %26 : vector<2x128xf32> to vector<1x2x128xf32>
    %cst_10 = arith.constant dense<0.000000e+00> : vector<1xf32>
    %28 = vector.multi_reduction <add>, %27, %cst_10 [1, 2] : vector<1x2x128xf32> to vector<1xf32>
    %29 = vector.shape_cast %28 : vector<1xf32> to vector<1x1x1xf32>
    %30 = vector.extract %29[0, 0, 0] : f32 from vector<1x1x1xf32>
    %cst_11 = arith.constant 0.0039682542 : f32
    %31 = arith.mulf %25, %cst_11 : f32
    %cst_12 = arith.constant 0.0039682542 : f32
    %32 = arith.mulf %30, %cst_12 : f32
    %33 = arith.mulf %31, %31 : f32
    %34 = arith.subf %32, %33 : f32
    %cst_13 = arith.constant 0.000000e+00 : f32
    %35 = arith.maximumf %34, %cst_13 : f32
    %c0_14 = arith.constant 0 : index
    %36 = memref.load %arg2[%c0_14] : memref<4xf32, #tpu.memory_space<smem>>
    %cst_15 = arith.constant 9.99999974E-6 : f32
    %37 = arith.addf %35, %cst_15 : f32
    %38 = math.rsqrt %37 : f32
    %39 = arith.mulf %36, %38 : f32
    %c0_16 = arith.constant 0 : index
    %40 = memref.load %arg3[%c0_16] : memref<4xf32, #tpu.memory_space<smem>>
    %41 = arith.mulf %31, %39 : f32
    %42 = arith.subf %40, %41 : f32
    %43 = vector.broadcast %39 : f32 to vector<2x128xf32>
    %44 = arith.mulf %19, %43 : vector<2x128xf32>
    %45 = vector.broadcast %42 : f32 to vector<2x128xf32>
    %46 = arith.addf %44, %45 : vector<2x128xf32>
    %cst_17 = arith.constant 0.000000e+00 : f32
    %47 = vector.broadcast %cst_17 : f32 to vector<2x128xf32>
    %48 = arith.maximumf %46, %47 : vector<2x128xf32>
    %c0_18 = arith.constant 0 : index
    %c0_19 = arith.constant 0 : index
    %49 = vector.load %arg9[%c0_18, %c0_19] : memref<2x132xf32, #tpu.memory_space<vmem>>, vector<2x128xf32>
    tpu.vector_store %arg9[%c0_18, %c0_19], %48 {strides = array<i32>} : memref<2x132xf32, #tpu.memory_space<vmem>>, vector<2x128xf32>,
    %c0_20 = arith.constant 0 : index
    %c1_21 = arith.constant 1 : index
    %50 = vector.load %arg9[%c0_20, %c1_21] : memref<2x132xf32, #tpu.memory_space<vmem>>, vector<2x128xf32>
    %51 = arith.addf %48, %50 : vector<2x128xf32>
    %cst_22 = arith.constant 5.000000e-01 : f32
    %52 = vector.broadcast %cst_22 : f32 to vector<2x128xf32>
    %53 = arith.mulf %51, %52 : vector<2x128xf32>
    %c0_23 = arith.constant 0 : index
    %c0_24 = arith.constant 0 : index
    %c0_25 = arith.constant 0 : index
    %54 = vector.load %arg8[%c0_23, %c0_24, %c0_25] : memref<4x2x132xf32, #tpu.memory_space<vmem>>, vector<1x2x128xf32>
    %55 = vector.shape_cast %54 : vector<1x2x128xf32> to vector<2x128xf32>
    %56 = vector.shape_cast %53 : vector<2x128xf32> to vector<1x2x128xf32>
    tpu.vector_store %arg8[%c0_23, %c0_24, %c0_25], %56 {strides = array<i32>} : memref<4x2x132xf32, #tpu.memory_space<vmem>>, vector<1x2x128xf32>,
    %c3 = arith.constant 3 : index
    %57 = memref.load %arg1[%c3] : memref<12xf32, #tpu.memory_space<smem>>
    %58 = vector.broadcast %57 : f32 to vector<2x128xf32>
    %59 = arith.mulf %58, %1 : vector<2x128xf32>
    %c4 = arith.constant 4 : index
    %60 = memref.load %arg1[%c4] : memref<12xf32, #tpu.memory_space<smem>>
    %61 = vector.broadcast %60 : f32 to vector<2x128xf32>
    %62 = arith.mulf %61, %3 : vector<2x128xf32>
    %63 = arith.addf %59, %62 : vector<2x128xf32>
    %c5 = arith.constant 5 : index
    %64 = memref.load %arg1[%c5] : memref<12xf32, #tpu.memory_space<smem>>
    %65 = vector.broadcast %64 : f32 to vector<2x128xf32>
    %66 = arith.mulf %65, %5 : vector<2x128xf32>
    %67 = arith.addf %63, %66 : vector<2x128xf32>
    %cst_26 = arith.constant 0.000000e+00 : f32
    %68 = vector.broadcast %cst_26 : f32 to vector<2x128xf32>
    %69 = arith.select %8, %67, %68 : vector<2x128xi1>, vector<2x128xf32>
    %70 = vector.shape_cast %69 : vector<2x128xf32> to vector<1x2x128xf32>
    %cst_27 = arith.constant dense<0.000000e+00> : vector<1xf32>
    %71 = vector.multi_reduction <add>, %70, %cst_27 [1, 2] : vector<1x2x128xf32> to vector<1xf32>
    %72 = vector.shape_cast %71 : vector<1xf32> to vector<1x1x1xf32>
    %73 = vector.extract %72[0, 0, 0] : f32 from vector<1x1x1xf32>
    %74 = arith.mulf %69, %69 : vector<2x128xf32>
    %75 = vector.shape_cast %74 : vector<2x128xf32> to vector<1x2x128xf32>
    %cst_28 = arith.constant dense<0.000000e+00> : vector<1xf32>
    %76 = vector.multi_reduction <add>, %75, %cst_28 [1, 2] : vector<1x2x128xf32> to vector<1xf32>
    %77 = vector.shape_cast %76 : vector<1xf32> to vector<1x1x1xf32>
    %78 = vector.extract %77[0, 0, 0] : f32 from vector<1x1x1xf32>
    %cst_29 = arith.constant 0.0039682542 : f32
    %79 = arith.mulf %73, %cst_29 : f32
    %cst_30 = arith.constant 0.0039682542 : f32
    %80 = arith.mulf %78, %cst_30 : f32
    %81 = arith.mulf %79, %79 : f32
    %82 = arith.subf %80, %81 : f32
    %cst_31 = arith.constant 0.000000e+00 : f32
    %83 = arith.maximumf %82, %cst_31 : f32
    %c1_32 = arith.constant 1 : index
    %84 = memref.load %arg2[%c1_32] : memref<4xf32, #tpu.memory_space<smem>>
    %cst_33 = arith.constant 9.99999974E-6 : f32
    %85 = arith.addf %83, %cst_33 : f32
    %86 = math.rsqrt %85 : f32
    %87 = arith.mulf %84, %86 : f32
    %c1_34 = arith.constant 1 : index
    %88 = memref.load %arg3[%c1_34] : memref<4xf32, #tpu.memory_space<smem>>
    %89 = arith.mulf %79, %87 : f32
    %90 = arith.subf %88, %89 : f32
    %91 = vector.broadcast %87 : f32 to vector<2x128xf32>
    %92 = arith.mulf %67, %91 : vector<2x128xf32>
    %93 = vector.broadcast %90 : f32 to vector<2x128xf32>
    %94 = arith.addf %92, %93 : vector<2x128xf32>
    %cst_35 = arith.constant 0.000000e+00 : f32
    %95 = vector.broadcast %cst_35 : f32 to vector<2x128xf32>
    %96 = arith.maximumf %94, %95 : vector<2x128xf32>
    %c0_36 = arith.constant 0 : index
    %c0_37 = arith.constant 0 : index
    %97 = vector.load %arg9[%c0_36, %c0_37] : memref<2x132xf32, #tpu.memory_space<vmem>>, vector<2x128xf32>
    tpu.vector_store %arg9[%c0_36, %c0_37], %96 {strides = array<i32>} : memref<2x132xf32, #tpu.memory_space<vmem>>, vector<2x128xf32>,
    %c0_38 = arith.constant 0 : index
    %c1_39 = arith.constant 1 : index
    %98 = vector.load %arg9[%c0_38, %c1_39] : memref<2x132xf32, #tpu.memory_space<vmem>>, vector<2x128xf32>
    %99 = arith.addf %96, %98 : vector<2x128xf32>
    %cst_40 = arith.constant 5.000000e-01 : f32
    %100 = vector.broadcast %cst_40 : f32 to vector<2x128xf32>
    %101 = arith.mulf %99, %100 : vector<2x128xf32>
    %c1_41 = arith.constant 1 : index
    %c0_42 = arith.constant 0 : index
    %c0_43 = arith.constant 0 : index
    %102 = vector.load %arg8[%c1_41, %c0_42, %c0_43] : memref<4x2x132xf32, #tpu.memory_space<vmem>>, vector<1x2x128xf32>
    %103 = vector.shape_cast %102 : vector<1x2x128xf32> to vector<2x128xf32>
    %104 = vector.shape_cast %101 : vector<2x128xf32> to vector<1x2x128xf32>
    tpu.vector_store %arg8[%c1_41, %c0_42, %c0_43], %104 {strides = array<i32>} : memref<4x2x132xf32, #tpu.memory_space<vmem>>, vector<1x2x128xf32>,
    %c6 = arith.constant 6 : index
    %105 = memref.load %arg1[%c6] : memref<12xf32, #tpu.memory_space<smem>>
    %106 = vector.broadcast %105 : f32 to vector<2x128xf32>
    %107 = arith.mulf %106, %1 : vector<2x128xf32>
    %c7 = arith.constant 7 : index
    %108 = memref.load %arg1[%c7] : memref<12xf32, #tpu.memory_space<smem>>
    %109 = vector.broadcast %108 : f32 to vector<2x128xf32>
    %110 = arith.mulf %109, %3 : vector<2x128xf32>
    %111 = arith.addf %107, %110 : vector<2x128xf32>
    %c8 = arith.constant 8 : index
    %112 = memref.load %arg1[%c8] : memref<12xf32, #tpu.memory_space<smem>>
    %113 = vector.broadcast %112 : f32 to vector<2x128xf32>
    %114 = arith.mulf %113, %5 : vector<2x128xf32>
    %115 = arith.addf %111, %114 : vector<2x128xf32>
    %cst_44 = arith.constant 0.000000e+00 : f32
    %116 = vector.broadcast %cst_44 : f32 to vector<2x128xf32>
    %117 = arith.select %8, %115, %116 : vector<2x128xi1>, vector<2x128xf32>
    %118 = vector.shape_cast %117 : vector<2x128xf32> to vector<1x2x128xf32>
    %cst_45 = arith.constant dense<0.000000e+00> : vector<1xf32>
    %119 = vector.multi_reduction <add>, %118, %cst_45 [1, 2] : vector<1x2x128xf32> to vector<1xf32>
    %120 = vector.shape_cast %119 : vector<1xf32> to vector<1x1x1xf32>
    %121 = vector.extract %120[0, 0, 0] : f32 from vector<1x1x1xf32>
    %122 = arith.mulf %117, %117 : vector<2x128xf32>
    %123 = vector.shape_cast %122 : vector<2x128xf32> to vector<1x2x128xf32>
    %cst_46 = arith.constant dense<0.000000e+00> : vector<1xf32>
    %124 = vector.multi_reduction <add>, %123, %cst_46 [1, 2] : vector<1x2x128xf32> to vector<1xf32>
    %125 = vector.shape_cast %124 : vector<1xf32> to vector<1x1x1xf32>
    %126 = vector.extract %125[0, 0, 0] : f32 from vector<1x1x1xf32>
    %cst_47 = arith.constant 0.0039682542 : f32
    %127 = arith.mulf %121, %cst_47 : f32
    %cst_48 = arith.constant 0.0039682542 : f32
    %128 = arith.mulf %126, %cst_48 : f32
    %129 = arith.mulf %127, %127 : f32
    %130 = arith.subf %128, %129 : f32
    %cst_49 = arith.constant 0.000000e+00 : f32
    %131 = arith.maximumf %130, %cst_49 : f32
    %c2_50 = arith.constant 2 : index
    %132 = memref.load %arg2[%c2_50] : memref<4xf32, #tpu.memory_space<smem>>
    %cst_51 = arith.constant 9.99999974E-6 : f32
    %133 = arith.addf %131, %cst_51 : f32
    %134 = math.rsqrt %133 : f32
    %135 = arith.mulf %132, %134 : f32
    %c2_52 = arith.constant 2 : index
    %136 = memref.load %arg3[%c2_52] : memref<4xf32, #tpu.memory_space<smem>>
    %137 = arith.mulf %127, %135 : f32
    %138 = arith.subf %136, %137 : f32
    %139 = vector.broadcast %135 : f32 to vector<2x128xf32>
    %140 = arith.mulf %115, %139 : vector<2x128xf32>
    %141 = vector.broadcast %138 : f32 to vector<2x128xf32>
    %142 = arith.addf %140, %141 : vector<2x128xf32>
    %cst_53 = arith.constant 0.000000e+00 : f32
    %143 = vector.broadcast %cst_53 : f32 to vector<2x128xf32>
    %144 = arith.maximumf %142, %143 : vector<2x128xf32>
    %c0_54 = arith.constant 0 : index
    %c0_55 = arith.constant 0 : index
    %145 = vector.load %arg9[%c0_54, %c0_55] : memref<2x132xf32, #tpu.memory_space<vmem>>, vector<2x128xf32>
    tpu.vector_store %arg9[%c0_54, %c0_55], %144 {strides = array<i32>} : memref<2x132xf32, #tpu.memory_space<vmem>>, vector<2x128xf32>,
    %c0_56 = arith.constant 0 : index
    %c1_57 = arith.constant 1 : index
    %146 = vector.load %arg9[%c0_56, %c1_57] : memref<2x132xf32, #tpu.memory_space<vmem>>, vector<2x128xf32>
    %147 = arith.addf %144, %146 : vector<2x128xf32>
    %cst_58 = arith.constant 5.000000e-01 : f32
    %148 = vector.broadcast %cst_58 : f32 to vector<2x128xf32>
    %149 = arith.mulf %147, %148 : vector<2x128xf32>
    %c2_59 = arith.constant 2 : index
    %c0_60 = arith.constant 0 : index
    %c0_61 = arith.constant 0 : index
    %150 = vector.load %arg8[%c2_59, %c0_60, %c0_61] : memref<4x2x132xf32, #tpu.memory_space<vmem>>, vector<1x2x128xf32>
    %151 = vector.shape_cast %150 : vector<1x2x128xf32> to vector<2x128xf32>
    %152 = vector.shape_cast %149 : vector<2x128xf32> to vector<1x2x128xf32>
    tpu.vector_store %arg8[%c2_59, %c0_60, %c0_61], %152 {strides = array<i32>} : memref<4x2x132xf32, #tpu.memory_space<vmem>>, vector<1x2x128xf32>,
    %c9 = arith.constant 9 : index
    %153 = memref.load %arg1[%c9] : memref<12xf32, #tpu.memory_space<smem>>
    %154 = vector.broadcast %153 : f32 to vector<2x128xf32>
    %155 = arith.mulf %154, %1 : vector<2x128xf32>
    %c10 = arith.constant 10 : index
    %156 = memref.load %arg1[%c10] : memref<12xf32, #tpu.memory_space<smem>>
    %157 = vector.broadcast %156 : f32 to vector<2x128xf32>
    %158 = arith.mulf %157, %3 : vector<2x128xf32>
    %159 = arith.addf %155, %158 : vector<2x128xf32>
    %c11 = arith.constant 11 : index
    %160 = memref.load %arg1[%c11] : memref<12xf32, #tpu.memory_space<smem>>
    %161 = vector.broadcast %160 : f32 to vector<2x128xf32>
    %162 = arith.mulf %161, %5 : vector<2x128xf32>
    %163 = arith.addf %159, %162 : vector<2x128xf32>
    %cst_62 = arith.constant 0.000000e+00 : f32
    %164 = vector.broadcast %cst_62 : f32 to vector<2x128xf32>
    %165 = arith.select %8, %163, %164 : vector<2x128xi1>, vector<2x128xf32>
    %166 = vector.shape_cast %165 : vector<2x128xf32> to vector<1x2x128xf32>
    %cst_63 = arith.constant dense<0.000000e+00> : vector<1xf32>
    %167 = vector.multi_reduction <add>, %166, %cst_63 [1, 2] : vector<1x2x128xf32> to vector<1xf32>
    %168 = vector.shape_cast %167 : vector<1xf32> to vector<1x1x1xf32>
    %169 = vector.extract %168[0, 0, 0] : f32 from vector<1x1x1xf32>
    %170 = arith.mulf %165, %165 : vector<2x128xf32>
    %171 = vector.shape_cast %170 : vector<2x128xf32> to vector<1x2x128xf32>
    %cst_64 = arith.constant dense<0.000000e+00> : vector<1xf32>
    %172 = vector.multi_reduction <add>, %171, %cst_64 [1, 2] : vector<1x2x128xf32> to vector<1xf32>
    %173 = vector.shape_cast %172 : vector<1xf32> to vector<1x1x1xf32>
    %174 = vector.extract %173[0, 0, 0] : f32 from vector<1x1x1xf32>
    %cst_65 = arith.constant 0.0039682542 : f32
    %175 = arith.mulf %169, %cst_65 : f32
    %cst_66 = arith.constant 0.0039682542 : f32
    %176 = arith.mulf %174, %cst_66 : f32
    %177 = arith.mulf %175, %175 : f32
    %178 = arith.subf %176, %177 : f32
    %cst_67 = arith.constant 0.000000e+00 : f32
    %179 = arith.maximumf %178, %cst_67 : f32
    %c3_68 = arith.constant 3 : index
    %180 = memref.load %arg2[%c3_68] : memref<4xf32, #tpu.memory_space<smem>>
    %cst_69 = arith.constant 9.99999974E-6 : f32
    %181 = arith.addf %179, %cst_69 : f32
    %182 = math.rsqrt %181 : f32
    %183 = arith.mulf %180, %182 : f32
    %c3_70 = arith.constant 3 : index
    %184 = memref.load %arg3[%c3_70] : memref<4xf32, #tpu.memory_space<smem>>
    %185 = arith.mulf %175, %183 : f32
    %186 = arith.subf %184, %185 : f32
    %187 = vector.broadcast %183 : f32 to vector<2x128xf32>
    %188 = arith.mulf %163, %187 : vector<2x128xf32>
    %189 = vector.broadcast %186 : f32 to vector<2x128xf32>
    %190 = arith.addf %188, %189 : vector<2x128xf32>
    %cst_71 = arith.constant 0.000000e+00 : f32
    %191 = vector.broadcast %cst_71 : f32 to vector<2x128xf32>
    %192 = arith.maximumf %190, %191 : vector<2x128xf32>
    %c0_72 = arith.constant 0 : index
    %c0_73 = arith.constant 0 : index
    %193 = vector.load %arg9[%c0_72, %c0_73] : memref<2x132xf32, #tpu.memory_space<vmem>>, vector<2x128xf32>
    tpu.vector_store %arg9[%c0_72, %c0_73], %192 {strides = array<i32>} : memref<2x132xf32, #tpu.memory_space<vmem>>, vector<2x128xf32>,
    %c0_74 = arith.constant 0 : index
    %c1_75 = arith.constant 1 : index
    %194 = vector.load %arg9[%c0_74, %c1_75] : memref<2x132xf32, #tpu.memory_space<vmem>>, vector<2x128xf32>
    %195 = arith.addf %192, %194 : vector<2x128xf32>
    %cst_76 = arith.constant 5.000000e-01 : f32
    %196 = vector.broadcast %cst_76 : f32 to vector<2x128xf32>
    %197 = arith.mulf %195, %196 : vector<2x128xf32>
    %c3_77 = arith.constant 3 : index
    %c0_78 = arith.constant 0 : index
    %c0_79 = arith.constant 0 : index
    %198 = vector.load %arg8[%c3_77, %c0_78, %c0_79] : memref<4x2x132xf32, #tpu.memory_space<vmem>>, vector<1x2x128xf32>
    %199 = vector.shape_cast %198 : vector<1x2x128xf32> to vector<2x128xf32>
    %200 = vector.shape_cast %197 : vector<2x128xf32> to vector<1x2x128xf32>
    tpu.vector_store %arg8[%c3_77, %c0_78, %c0_79], %200 {strides = array<i32>} : memref<4x2x132xf32, #tpu.memory_space<vmem>>, vector<1x2x128xf32>,
    %c0_80 = arith.constant 0 : index
    %c0_81 = arith.constant 0 : index
    %c0_82 = arith.constant 0 : index
    %201 = vector.load %arg8[%c0_80, %c0_81, %c0_82] : memref<4x2x132xf32, #tpu.memory_space<vmem>>, vector<1x2x128xf32>
    %202 = vector.shape_cast %201 : vector<1x2x128xf32> to vector<2x128xf32>
    %c0_83 = arith.constant 0 : index
    %c0_84 = arith.constant 0 : index
    %c2_85 = arith.constant 2 : index
    %203 = vector.load %arg8[%c0_83, %c0_84, %c2_85] : memref<4x2x132xf32, #tpu.memory_space<vmem>>, vector<1x2x128xf32>
    %204 = vector.shape_cast %203 : vector<1x2x128xf32> to vector<2x128xf32>
    %c0_86 = arith.constant 0 : index
    %c0_87 = arith.constant 0 : index
    %c4_88 = arith.constant 4 : index
    %205 = vector.load %arg8[%c0_86, %c0_87, %c4_88] : memref<4x2x132xf32, #tpu.memory_space<vmem>>, vector<1x2x128xf32>
    %206 = vector.shape_cast %205 : vector<1x2x128xf32> to vector<2x128xf32>
    %c1_89 = arith.constant 1 : index
    %c0_90 = arith.constant 0 : index
    %c0_91 = arith.constant 0 : index
    %207 = vector.load %arg8[%c1_89, %c0_90, %c0_91] : memref<4x2x132xf32, #tpu.memory_space<vmem>>, vector<1x2x128xf32>
    %208 = vector.shape_cast %207 : vector<1x2x128xf32> to vector<2x128xf32>
    %c1_92 = arith.constant 1 : index
    %c0_93 = arith.constant 0 : index
    %c2_94 = arith.constant 2 : index
    %209 = vector.load %arg8[%c1_92, %c0_93, %c2_94] : memref<4x2x132xf32, #tpu.memory_space<vmem>>, vector<1x2x128xf32>
    %210 = vector.shape_cast %209 : vector<1x2x128xf32> to vector<2x128xf32>
    %c1_95 = arith.constant 1 : index
    %c0_96 = arith.constant 0 : index
    %c4_97 = arith.constant 4 : index
    %211 = vector.load %arg8[%c1_95, %c0_96, %c4_97] : memref<4x2x132xf32, #tpu.memory_space<vmem>>, vector<1x2x128xf32>
    %212 = vector.shape_cast %211 : vector<1x2x128xf32> to vector<2x128xf32>
    %c2_98 = arith.constant 2 : index
    %c0_99 = arith.constant 0 : index
    %c0_100 = arith.constant 0 : index
    %213 = vector.load %arg8[%c2_98, %c0_99, %c0_100] : memref<4x2x132xf32, #tpu.memory_space<vmem>>, vector<1x2x128xf32>
    %214 = vector.shape_cast %213 : vector<1x2x128xf32> to vector<2x128xf32>
    %c2_101 = arith.constant 2 : index
    %c0_102 = arith.constant 0 : index
    %c2_103 = arith.constant 2 : index
    %215 = vector.load %arg8[%c2_101, %c0_102, %c2_103] : memref<4x2x132xf32, #tpu.memory_space<vmem>>, vector<1x2x128xf32>
    %216 = vector.shape_cast %215 : vector<1x2x128xf32> to vector<2x128xf32>
    %c2_104 = arith.constant 2 : index
    %c0_105 = arith.constant 0 : index
    %c4_106 = arith.constant 4 : index
    %217 = vector.load %arg8[%c2_104, %c0_105, %c4_106] : memref<4x2x132xf32, #tpu.memory_space<vmem>>, vector<1x2x128xf32>
    %218 = vector.shape_cast %217 : vector<1x2x128xf32> to vector<2x128xf32>
    %c3_107 = arith.constant 3 : index
    %c0_108 = arith.constant 0 : index
    %c0_109 = arith.constant 0 : index
    %219 = vector.load %arg8[%c3_107, %c0_108, %c0_109] : memref<4x2x132xf32, #tpu.memory_space<vmem>>, vector<1x2x128xf32>
    %220 = vector.shape_cast %219 : vector<1x2x128xf32> to vector<2x128xf32>
    %c3_110 = arith.constant 3 : index
    %c0_111 = arith.constant 0 : index
    %c2_112 = arith.constant 2 : index
    %221 = vector.load %arg8[%c3_110, %c0_111, %c2_112] : memref<4x2x132xf32, #tpu.memory_space<vmem>>, vector<1x2x128xf32>
    %222 = vector.shape_cast %221 : vector<1x2x128xf32> to vector<2x128xf32>
    %c3_113 = arith.constant 3 : index
    %c0_114 = arith.constant 0 : index
    %c4_115 = arith.constant 4 : index
    %223 = vector.load %arg8[%c3_113, %c0_114, %c4_115] : memref<4x2x132xf32, #tpu.memory_space<vmem>>, vector<1x2x128xf32>
    %224 = vector.shape_cast %223 : vector<1x2x128xf32> to vector<2x128xf32>
    %225 = tpu.iota {dimensions = array<i32: 1>} : vector<2x128xi32>
    %c122_i32 = arith.constant 122 : i32
    %226 = vector.broadcast %c122_i32 : i32 to vector<2x128xi32>
    %227 = arith.cmpi slt, %225, %226 : vector<2x128xi32>
    %c1_i32 = arith.constant 1 : i32
    %228 = vector.broadcast %c1_i32 : i32 to vector<2x128xi32>
    %229 = arith.andi %225, %228 : vector<2x128xi32>
    %c0_i32 = arith.constant 0 : i32
    %230 = vector.broadcast %c0_i32 : i32 to vector<2x128xi32>
    %231 = arith.cmpi eq, %229, %230 : vector<2x128xi32>
    %232 = arith.andi %227, %231 : vector<2x128xi1>
    %c0_116 = arith.constant 0 : index
    %233 = memref.load %arg4[%c0_116] : memref<96xf32, #tpu.memory_space<smem>>
    %234 = vector.broadcast %233 : f32 to vector<2x128xf32>
    %235 = arith.mulf %234, %202 : vector<2x128xf32>
    %c1_117 = arith.constant 1 : index
    %236 = memref.load %arg4[%c1_117] : memref<96xf32, #tpu.memory_space<smem>>
    %237 = vector.broadcast %236 : f32 to vector<2x128xf32>
    %238 = arith.mulf %237, %204 : vector<2x128xf32>
    %239 = arith.addf %235, %238 : vector<2x128xf32>
    %c2_118 = arith.constant 2 : index
    %240 = memref.load %arg4[%c2_118] : memref<96xf32, #tpu.memory_space<smem>>
    %241 = vector.broadcast %240 : f32 to vector<2x128xf32>
    %242 = arith.mulf %241, %206 : vector<2x128xf32>
    %243 = arith.addf %239, %242 : vector<2x128xf32>
    %c3_119 = arith.constant 3 : index
    %244 = memref.load %arg4[%c3_119] : memref<96xf32, #tpu.memory_space<smem>>
    %245 = vector.broadcast %244 : f32 to vector<2x128xf32>
    %246 = arith.mulf %245, %208 : vector<2x128xf32>
    %247 = arith.addf %243, %246 : vector<2x128xf32>
    %c4_120 = arith.constant 4 : index
    %248 = memref.load %arg4[%c4_120] : memref<96xf32, #tpu.memory_space<smem>>
    %249 = vector.broadcast %248 : f32 to vector<2x128xf32>
    %250 = arith.mulf %249, %210 : vector<2x128xf32>
    %251 = arith.addf %247, %250 : vector<2x128xf32>
    %c5_121 = arith.constant 5 : index
    %252 = memref.load %arg4[%c5_121] : memref<96xf32, #tpu.memory_space<smem>>
    %253 = vector.broadcast %252 : f32 to vector<2x128xf32>
    %254 = arith.mulf %253, %212 : vector<2x128xf32>
    %255 = arith.addf %251, %254 : vector<2x128xf32>
    %c6_122 = arith.constant 6 : index
    %256 = memref.load %arg4[%c6_122] : memref<96xf32, #tpu.memory_space<smem>>
    %257 = vector.broadcast %256 : f32 to vector<2x128xf32>
    %258 = arith.mulf %257, %214 : vector<2x128xf32>
    %259 = arith.addf %255, %258 : vector<2x128xf32>
    %c7_123 = arith.constant 7 : index
    %260 = memref.load %arg4[%c7_123] : memref<96xf32, #tpu.memory_space<smem>>
    %261 = vector.broadcast %260 : f32 to vector<2x128xf32>
    %262 = arith.mulf %261, %216 : vector<2x128xf32>
    %263 = arith.addf %259, %262 : vector<2x128xf32>
    %c8_124 = arith.constant 8 : index
    %264 = memref.load %arg4[%c8_124] : memref<96xf32, #tpu.memory_space<smem>>
    %265 = vector.broadcast %264 : f32 to vector<2x128xf32>
    %266 = arith.mulf %265, %218 : vector<2x128xf32>
    %267 = arith.addf %263, %266 : vector<2x128xf32>
    %c9_125 = arith.constant 9 : index
    %268 = memref.load %arg4[%c9_125] : memref<96xf32, #tpu.memory_space<smem>>
    %269 = vector.broadcast %268 : f32 to vector<2x128xf32>
    %270 = arith.mulf %269, %220 : vector<2x128xf32>
    %271 = arith.addf %267, %270 : vector<2x128xf32>
    %c10_126 = arith.constant 10 : index
    %272 = memref.load %arg4[%c10_126] : memref<96xf32, #tpu.memory_space<smem>>
    %273 = vector.broadcast %272 : f32 to vector<2x128xf32>
    %274 = arith.mulf %273, %222 : vector<2x128xf32>
    %275 = arith.addf %271, %274 : vector<2x128xf32>
    %c11_127 = arith.constant 11 : index
    %276 = memref.load %arg4[%c11_127] : memref<96xf32, #tpu.memory_space<smem>>
    %277 = vector.broadcast %276 : f32 to vector<2x128xf32>
    %278 = arith.mulf %277, %224 : vector<2x128xf32>
    %279 = arith.addf %275, %278 : vector<2x128xf32>
    %cst_128 = arith.constant 0.000000e+00 : f32
    %280 = vector.broadcast %cst_128 : f32 to vector<2x128xf32>
    %281 = arith.select %232, %279, %280 : vector<2x128xi1>, vector<2x128xf32>
    %282 = vector.shape_cast %281 : vector<2x128xf32> to vector<1x2x128xf32>
    %cst_129 = arith.constant dense<0.000000e+00> : vector<1xf32>
    %283 = vector.multi_reduction <add>, %282, %cst_129 [1, 2] : vector<1x2x128xf32> to vector<1xf32>
    %284 = vector.shape_cast %283 : vector<1xf32> to vector<1x1x1xf32>
    %285 = vector.extract %284[0, 0, 0] : f32 from vector<1x1x1xf32>
    %286 = arith.mulf %281, %281 : vector<2x128xf32>
    %287 = vector.shape_cast %286 : vector<2x128xf32> to vector<1x2x128xf32>
    %cst_130 = arith.constant dense<0.000000e+00> : vector<1xf32>
    %288 = vector.multi_reduction <add>, %287, %cst_130 [1, 2] : vector<1x2x128xf32> to vector<1xf32>
    %289 = vector.shape_cast %288 : vector<1xf32> to vector<1x1x1xf32>
    %290 = vector.extract %289[0, 0, 0] : f32 from vector<1x1x1xf32>
    %cst_131 = arith.constant 0.00819672085 : f32
    %291 = arith.mulf %285, %cst_131 : f32
    %cst_132 = arith.constant 0.00819672085 : f32
    %292 = arith.mulf %290, %cst_132 : f32
    %293 = arith.mulf %291, %291 : f32
    %294 = arith.subf %292, %293 : f32
    %cst_133 = arith.constant 0.000000e+00 : f32
    %295 = arith.maximumf %294, %cst_133 : f32
    %c0_134 = arith.constant 0 : index
    %296 = memref.load %arg5[%c0_134] : memref<8xf32, #tpu.memory_space<smem>>
    %cst_135 = arith.constant 9.99999974E-6 : f32
    %297 = arith.addf %295, %cst_135 : f32
    %298 = math.rsqrt %297 : f32
    %299 = arith.mulf %296, %298 : f32
    %c0_136 = arith.constant 0 : index
    %300 = memref.load %arg6[%c0_136] : memref<8xf32, #tpu.memory_space<smem>>
    %301 = arith.mulf %291, %299 : f32
    %302 = arith.subf %300, %301 : f32
    %303 = vector.broadcast %299 : f32 to vector<2x128xf32>
    %304 = arith.mulf %279, %303 : vector<2x128xf32>
    %305 = vector.broadcast %302 : f32 to vector<2x128xf32>
    %306 = arith.addf %304, %305 : vector<2x128xf32>
    %cst_137 = arith.constant 0.000000e+00 : f32
    %307 = vector.broadcast %cst_137 : f32 to vector<2x128xf32>
    %308 = arith.maximumf %306, %307 : vector<2x128xf32>
    %c0_138 = arith.constant 0 : index
    %c0_139 = arith.constant 0 : index
    %309 = vector.load %arg9[%c0_138, %c0_139] : memref<2x132xf32, #tpu.memory_space<vmem>>, vector<2x128xf32>
    tpu.vector_store %arg9[%c0_138, %c0_139], %308 {strides = array<i32>} : memref<2x132xf32, #tpu.memory_space<vmem>>, vector<2x128xf32>,
    %c0_140 = arith.constant 0 : index
    %c2_141 = arith.constant 2 : index
    %310 = vector.load %arg9[%c0_140, %c2_141] : memref<2x132xf32, #tpu.memory_space<vmem>>, vector<2x128xf32>
    %311 = arith.addf %308, %310 : vector<2x128xf32>
    %cst_142 = arith.constant 5.000000e-01 : f32
    %312 = vector.broadcast %cst_142 : f32 to vector<2x128xf32>
    %313 = arith.mulf %311, %312 : vector<2x128xf32>
    %c0_143 = arith.constant 0 : index
    %c0_144 = arith.constant 0 : index
    %c0_145 = arith.constant 0 : index
    %314 = vector.load %arg7[%c0_143, %c0_144, %c0_145] : memref<8x2x128xf32, #tpu.memory_space<vmem>>, vector<1x2x128xf32>
    %315 = vector.shape_cast %314 : vector<1x2x128xf32> to vector<2x128xf32>
    %316 = vector.shape_cast %313 : vector<2x128xf32> to vector<1x2x128xf32>
    tpu.vector_store %arg7[%c0_143, %c0_144, %c0_145], %316 {strides = array<i32>} : memref<8x2x128xf32, #tpu.memory_space<vmem>>, vector<1x2x128xf32>,
    %c12 = arith.constant 12 : index
    %317 = memref.load %arg4[%c12] : memref<96xf32, #tpu.memory_space<smem>>
    %318 = vector.broadcast %317 : f32 to vector<2x128xf32>
    %319 = arith.mulf %318, %202 : vector<2x128xf32>
    %c13 = arith.constant 13 : index
    %320 = memref.load %arg4[%c13] : memref<96xf32, #tpu.memory_space<smem>>
    %321 = vector.broadcast %320 : f32 to vector<2x128xf32>
    %322 = arith.mulf %321, %204 : vector<2x128xf32>
    %323 = arith.addf %319, %322 : vector<2x128xf32>
    %c14 = arith.constant 14 : index
    %324 = memref.load %arg4[%c14] : memref<96xf32, #tpu.memory_space<smem>>
    %325 = vector.broadcast %324 : f32 to vector<2x128xf32>
    %326 = arith.mulf %325, %206 : vector<2x128xf32>
    %327 = arith.addf %323, %326 : vector<2x128xf32>
    %c15 = arith.constant 15 : index
    %328 = memref.load %arg4[%c15] : memref<96xf32, #tpu.memory_space<smem>>
    %329 = vector.broadcast %328 : f32 to vector<2x128xf32>
    %330 = arith.mulf %329, %208 : vector<2x128xf32>
    %331 = arith.addf %327, %330 : vector<2x128xf32>
    %c16 = arith.constant 16 : index
    %332 = memref.load %arg4[%c16] : memref<96xf32, #tpu.memory_space<smem>>
    %333 = vector.broadcast %332 : f32 to vector<2x128xf32>
    %334 = arith.mulf %333, %210 : vector<2x128xf32>
    %335 = arith.addf %331, %334 : vector<2x128xf32>
    %c17 = arith.constant 17 : index
    %336 = memref.load %arg4[%c17] : memref<96xf32, #tpu.memory_space<smem>>
    %337 = vector.broadcast %336 : f32 to vector<2x128xf32>
    %338 = arith.mulf %337, %212 : vector<2x128xf32>
    %339 = arith.addf %335, %338 : vector<2x128xf32>
    %c18 = arith.constant 18 : index
    %340 = memref.load %arg4[%c18] : memref<96xf32, #tpu.memory_space<smem>>
    %341 = vector.broadcast %340 : f32 to vector<2x128xf32>
    %342 = arith.mulf %341, %214 : vector<2x128xf32>
    %343 = arith.addf %339, %342 : vector<2x128xf32>
    %c19 = arith.constant 19 : index
    %344 = memref.load %arg4[%c19] : memref<96xf32, #tpu.memory_space<smem>>
    %345 = vector.broadcast %344 : f32 to vector<2x128xf32>
    %346 = arith.mulf %345, %216 : vector<2x128xf32>
    %347 = arith.addf %343, %346 : vector<2x128xf32>
    %c20 = arith.constant 20 : index
    %348 = memref.load %arg4[%c20] : memref<96xf32, #tpu.memory_space<smem>>
    %349 = vector.broadcast %348 : f32 to vector<2x128xf32>
    %350 = arith.mulf %349, %218 : vector<2x128xf32>
    %351 = arith.addf %347, %350 : vector<2x128xf32>
    %c21 = arith.constant 21 : index
    %352 = memref.load %arg4[%c21] : memref<96xf32, #tpu.memory_space<smem>>
    %353 = vector.broadcast %352 : f32 to vector<2x128xf32>
    %354 = arith.mulf %353, %220 : vector<2x128xf32>
    %355 = arith.addf %351, %354 : vector<2x128xf32>
    %c22 = arith.constant 22 : index
    %356 = memref.load %arg4[%c22] : memref<96xf32, #tpu.memory_space<smem>>
    %357 = vector.broadcast %356 : f32 to vector<2x128xf32>
    %358 = arith.mulf %357, %222 : vector<2x128xf32>
    %359 = arith.addf %355, %358 : vector<2x128xf32>
    %c23 = arith.constant 23 : index
    %360 = memref.load %arg4[%c23] : memref<96xf32, #tpu.memory_space<smem>>
    %361 = vector.broadcast %360 : f32 to vector<2x128xf32>
    %362 = arith.mulf %361, %224 : vector<2x128xf32>
    %363 = arith.addf %359, %362 : vector<2x128xf32>
    %cst_146 = arith.constant 0.000000e+00 : f32
    %364 = vector.broadcast %cst_146 : f32 to vector<2x128xf32>
    %365 = arith.select %232, %363, %364 : vector<2x128xi1>, vector<2x128xf32>
    %366 = vector.shape_cast %365 : vector<2x128xf32> to vector<1x2x128xf32>
    %cst_147 = arith.constant dense<0.000000e+00> : vector<1xf32>
    %367 = vector.multi_reduction <add>, %366, %cst_147 [1, 2] : vector<1x2x128xf32> to vector<1xf32>
    %368 = vector.shape_cast %367 : vector<1xf32> to vector<1x1x1xf32>
    %369 = vector.extract %368[0, 0, 0] : f32 from vector<1x1x1xf32>
    %370 = arith.mulf %365, %365 : vector<2x128xf32>
    %371 = vector.shape_cast %370 : vector<2x128xf32> to vector<1x2x128xf32>
    %cst_148 = arith.constant dense<0.000000e+00> : vector<1xf32>
    %372 = vector.multi_reduction <add>, %371, %cst_148 [1, 2] : vector<1x2x128xf32> to vector<1xf32>
    %373 = vector.shape_cast %372 : vector<1xf32> to vector<1x1x1xf32>
    %374 = vector.extract %373[0, 0, 0] : f32 from vector<1x1x1xf32>
    %cst_149 = arith.constant 0.00819672085 : f32
    %375 = arith.mulf %369, %cst_149 : f32
    %cst_150 = arith.constant 0.00819672085 : f32
    %376 = arith.mulf %374, %cst_150 : f32
    %377 = arith.mulf %375, %375 : f32
    %378 = arith.subf %376, %377 : f32
    %cst_151 = arith.constant 0.000000e+00 : f32
    %379 = arith.maximumf %378, %cst_151 : f32
    %c1_152 = arith.constant 1 : index
    %380 = memref.load %arg5[%c1_152] : memref<8xf32, #tpu.memory_space<smem>>
    %cst_153 = arith.constant 9.99999974E-6 : f32
    %381 = arith.addf %379, %cst_153 : f32
    %382 = math.rsqrt %381 : f32
    %383 = arith.mulf %380, %382 : f32
    %c1_154 = arith.constant 1 : index
    %384 = memref.load %arg6[%c1_154] : memref<8xf32, #tpu.memory_space<smem>>
    %385 = arith.mulf %375, %383 : f32
    %386 = arith.subf %384, %385 : f32
    %387 = vector.broadcast %383 : f32 to vector<2x128xf32>
    %388 = arith.mulf %363, %387 : vector<2x128xf32>
    %389 = vector.broadcast %386 : f32 to vector<2x128xf32>
    %390 = arith.addf %388, %389 : vector<2x128xf32>
    %cst_155 = arith.constant 0.000000e+00 : f32
    %391 = vector.broadcast %cst_155 : f32 to vector<2x128xf32>
    %392 = arith.maximumf %390, %391 : vector<2x128xf32>
    %c0_156 = arith.constant 0 : index
    %c0_157 = arith.constant 0 : index
    %393 = vector.load %arg9[%c0_156, %c0_157] : memref<2x132xf32, #tpu.memory_space<vmem>>, vector<2x128xf32>
    tpu.vector_store %arg9[%c0_156, %c0_157], %392 {strides = array<i32>} : memref<2x132xf32, #tpu.memory_space<vmem>>, vector<2x128xf32>,
    %c0_158 = arith.constant 0 : index
    %c2_159 = arith.constant 2 : index
    %394 = vector.load %arg9[%c0_158, %c2_159] : memref<2x132xf32, #tpu.memory_space<vmem>>, vector<2x128xf32>
    %395 = arith.addf %392, %394 : vector<2x128xf32>
    %cst_160 = arith.constant 5.000000e-01 : f32
    %396 = vector.broadcast %cst_160 : f32 to vector<2x128xf32>
    %397 = arith.mulf %395, %396 : vector<2x128xf32>
    %c1_161 = arith.constant 1 : index
    %c0_162 = arith.constant 0 : index
    %c0_163 = arith.constant 0 : index
    %398 = vector.load %arg7[%c1_161, %c0_162, %c0_163] : memref<8x2x128xf32, #tpu.memory_space<vmem>>, vector<1x2x128xf32>
    %399 = vector.shape_cast %398 : vector<1x2x128xf32> to vector<2x128xf32>
    %400 = vector.shape_cast %397 : vector<2x128xf32> to vector<1x2x128xf32>
    tpu.vector_store %arg7[%c1_161, %c0_162, %c0_163], %400 {strides = array<i32>} : memref<8x2x128xf32, #tpu.memory_space<vmem>>, vector<1x2x128xf32>,
    %c24 = arith.constant 24 : index
    %401 = memref.load %arg4[%c24] : memref<96xf32, #tpu.memory_space<smem>>
    %402 = vector.broadcast %401 : f32 to vector<2x128xf32>
    %403 = arith.mulf %402, %202 : vector<2x128xf32>
    %c25 = arith.constant 25 : index
    %404 = memref.load %arg4[%c25] : memref<96xf32, #tpu.memory_space<smem>>
    %405 = vector.broadcast %404 : f32 to vector<2x128xf32>
    %406 = arith.mulf %405, %204 : vector<2x128xf32>
    %407 = arith.addf %403, %406 : vector<2x128xf32>
    %c26 = arith.constant 26 : index
    %408 = memref.load %arg4[%c26] : memref<96xf32, #tpu.memory_space<smem>>
    %409 = vector.broadcast %408 : f32 to vector<2x128xf32>
    %410 = arith.mulf %409, %206 : vector<2x128xf32>
    %411 = arith.addf %407, %410 : vector<2x128xf32>
    %c27 = arith.constant 27 : index
    %412 = memref.load %arg4[%c27] : memref<96xf32, #tpu.memory_space<smem>>
    %413 = vector.broadcast %412 : f32 to vector<2x128xf32>
    %414 = arith.mulf %413, %208 : vector<2x128xf32>
    %415 = arith.addf %411, %414 : vector<2x128xf32>
    %c28 = arith.constant 28 : index
    %416 = memref.load %arg4[%c28] : memref<96xf32, #tpu.memory_space<smem>>
    %417 = vector.broadcast %416 : f32 to vector<2x128xf32>
    %418 = arith.mulf %417, %210 : vector<2x128xf32>
    %419 = arith.addf %415, %418 : vector<2x128xf32>
    %c29 = arith.constant 29 : index
    %420 = memref.load %arg4[%c29] : memref<96xf32, #tpu.memory_space<smem>>
    %421 = vector.broadcast %420 : f32 to vector<2x128xf32>
    %422 = arith.mulf %421, %212 : vector<2x128xf32>
    %423 = arith.addf %419, %422 : vector<2x128xf32>
    %c30 = arith.constant 30 : index
    %424 = memref.load %arg4[%c30] : memref<96xf32, #tpu.memory_space<smem>>
    %425 = vector.broadcast %424 : f32 to vector<2x128xf32>
    %426 = arith.mulf %425, %214 : vector<2x128xf32>
    %427 = arith.addf %423, %426 : vector<2x128xf32>
    %c31 = arith.constant 31 : index
    %428 = memref.load %arg4[%c31] : memref<96xf32, #tpu.memory_space<smem>>
    %429 = vector.broadcast %428 : f32 to vector<2x128xf32>
    %430 = arith.mulf %429, %216 : vector<2x128xf32>
    %431 = arith.addf %427, %430 : vector<2x128xf32>
    %c32 = arith.constant 32 : index
    %432 = memref.load %arg4[%c32] : memref<96xf32, #tpu.memory_space<smem>>
    %433 = vector.broadcast %432 : f32 to vector<2x128xf32>
    %434 = arith.mulf %433, %218 : vector<2x128xf32>
    %435 = arith.addf %431, %434 : vector<2x128xf32>
    %c33 = arith.constant 33 : index
    %436 = memref.load %arg4[%c33] : memref<96xf32, #tpu.memory_space<smem>>
    %437 = vector.broadcast %436 : f32 to vector<2x128xf32>
    %438 = arith.mulf %437, %220 : vector<2x128xf32>
    %439 = arith.addf %435, %438 : vector<2x128xf32>
    %c34 = arith.constant 34 : index
    %440 = memref.load %arg4[%c34] : memref<96xf32, #tpu.memory_space<smem>>
    %441 = vector.broadcast %440 : f32 to vector<2x128xf32>
    %442 = arith.mulf %441, %222 : vector<2x128xf32>
    %443 = arith.addf %439, %442 : vector<2x128xf32>
    %c35 = arith.constant 35 : index
    %444 = memref.load %arg4[%c35] : memref<96xf32, #tpu.memory_space<smem>>
    %445 = vector.broadcast %444 : f32 to vector<2x128xf32>
    %446 = arith.mulf %445, %224 : vector<2x128xf32>
    %447 = arith.addf %443, %446 : vector<2x128xf32>
    %cst_164 = arith.constant 0.000000e+00 : f32
    %448 = vector.broadcast %cst_164 : f32 to vector<2x128xf32>
    %449 = arith.select %232, %447, %448 : vector<2x128xi1>, vector<2x128xf32>
    %450 = vector.shape_cast %449 : vector<2x128xf32> to vector<1x2x128xf32>
    %cst_165 = arith.constant dense<0.000000e+00> : vector<1xf32>
    %451 = vector.multi_reduction <add>, %450, %cst_165 [1, 2] : vector<1x2x128xf32> to vector<1xf32>
    %452 = vector.shape_cast %451 : vector<1xf32> to vector<1x1x1xf32>
    %453 = vector.extract %452[0, 0, 0] : f32 from vector<1x1x1xf32>
    %454 = arith.mulf %449, %449 : vector<2x128xf32>
    %455 = vector.shape_cast %454 : vector<2x128xf32> to vector<1x2x128xf32>
    %cst_166 = arith.constant dense<0.000000e+00> : vector<1xf32>
    %456 = vector.multi_reduction <add>, %455, %cst_166 [1, 2] : vector<1x2x128xf32> to vector<1xf32>
    %457 = vector.shape_cast %456 : vector<1xf32> to vector<1x1x1xf32>
    %458 = vector.extract %457[0, 0, 0] : f32 from vector<1x1x1xf32>
    %cst_167 = arith.constant 0.00819672085 : f32
    %459 = arith.mulf %453, %cst_167 : f32
    %cst_168 = arith.constant 0.00819672085 : f32
    %460 = arith.mulf %458, %cst_168 : f32
    %461 = arith.mulf %459, %459 : f32
    %462 = arith.subf %460, %461 : f32
    %cst_169 = arith.constant 0.000000e+00 : f32
    %463 = arith.maximumf %462, %cst_169 : f32
    %c2_170 = arith.constant 2 : index
    %464 = memref.load %arg5[%c2_170] : memref<8xf32, #tpu.memory_space<smem>>
    %cst_171 = arith.constant 9.99999974E-6 : f32
    %465 = arith.addf %463, %cst_171 : f32
    %466 = math.rsqrt %465 : f32
    %467 = arith.mulf %464, %466 : f32
    %c2_172 = arith.constant 2 : index
    %468 = memref.load %arg6[%c2_172] : memref<8xf32, #tpu.memory_space<smem>>
    %469 = arith.mulf %459, %467 : f32
    %470 = arith.subf %468, %469 : f32
    %471 = vector.broadcast %467 : f32 to vector<2x128xf32>
    %472 = arith.mulf %447, %471 : vector<2x128xf32>
    %473 = vector.broadcast %470 : f32 to vector<2x128xf32>
    %474 = arith.addf %472, %473 : vector<2x128xf32>
    %cst_173 = arith.constant 0.000000e+00 : f32
    %475 = vector.broadcast %cst_173 : f32 to vector<2x128xf32>
    %476 = arith.maximumf %474, %475 : vector<2x128xf32>
    %c0_174 = arith.constant 0 : index
    %c0_175 = arith.constant 0 : index
    %477 = vector.load %arg9[%c0_174, %c0_175] : memref<2x132xf32, #tpu.memory_space<vmem>>, vector<2x128xf32>
    tpu.vector_store %arg9[%c0_174, %c0_175], %476 {strides = array<i32>} : memref<2x132xf32, #tpu.memory_space<vmem>>, vector<2x128xf32>,
    %c0_176 = arith.constant 0 : index
    %c2_177 = arith.constant 2 : index
    %478 = vector.load %arg9[%c0_176, %c2_177] : memref<2x132xf32, #tpu.memory_space<vmem>>, vector<2x128xf32>
    %479 = arith.addf %476, %478 : vector<2x128xf32>
    %cst_178 = arith.constant 5.000000e-01 : f32
    %480 = vector.broadcast %cst_178 : f32 to vector<2x128xf32>
    %481 = arith.mulf %479, %480 : vector<2x128xf32>
    %c2_179 = arith.constant 2 : index
    %c0_180 = arith.constant 0 : index
    %c0_181 = arith.constant 0 : index
    %482 = vector.load %arg7[%c2_179, %c0_180, %c0_181] : memref<8x2x128xf32, #tpu.memory_space<vmem>>, vector<1x2x128xf32>
    %483 = vector.shape_cast %482 : vector<1x2x128xf32> to vector<2x128xf32>
    %484 = vector.shape_cast %481 : vector<2x128xf32> to vector<1x2x128xf32>
    tpu.vector_store %arg7[%c2_179, %c0_180, %c0_181], %484 {strides = array<i32>} : memref<8x2x128xf32, #tpu.memory_space<vmem>>, vector<1x2x128xf32>,
    %c36 = arith.constant 36 : index
    %485 = memref.load %arg4[%c36] : memref<96xf32, #tpu.memory_space<smem>>
    %486 = vector.broadcast %485 : f32 to vector<2x128xf32>
    %487 = arith.mulf %486, %202 : vector<2x128xf32>
    %c37 = arith.constant 37 : index
    %488 = memref.load %arg4[%c37] : memref<96xf32, #tpu.memory_space<smem>>
    %489 = vector.broadcast %488 : f32 to vector<2x128xf32>
    %490 = arith.mulf %489, %204 : vector<2x128xf32>
    %491 = arith.addf %487, %490 : vector<2x128xf32>
    %c38 = arith.constant 38 : index
    %492 = memref.load %arg4[%c38] : memref<96xf32, #tpu.memory_space<smem>>
    %493 = vector.broadcast %492 : f32 to vector<2x128xf32>
    %494 = arith.mulf %493, %206 : vector<2x128xf32>
    %495 = arith.addf %491, %494 : vector<2x128xf32>
    %c39 = arith.constant 39 : index
    %496 = memref.load %arg4[%c39] : memref<96xf32, #tpu.memory_space<smem>>
    %497 = vector.broadcast %496 : f32 to vector<2x128xf32>
    %498 = arith.mulf %497, %208 : vector<2x128xf32>
    %499 = arith.addf %495, %498 : vector<2x128xf32>
    %c40 = arith.constant 40 : index
    %500 = memref.load %arg4[%c40] : memref<96xf32, #tpu.memory_space<smem>>
    %501 = vector.broadcast %500 : f32 to vector<2x128xf32>
    %502 = arith.mulf %501, %210 : vector<2x128xf32>
    %503 = arith.addf %499, %502 : vector<2x128xf32>
    %c41 = arith.constant 41 : index
    %504 = memref.load %arg4[%c41] : memref<96xf32, #tpu.memory_space<smem>>
    %505 = vector.broadcast %504 : f32 to vector<2x128xf32>
    %506 = arith.mulf %505, %212 : vector<2x128xf32>
    %507 = arith.addf %503, %506 : vector<2x128xf32>
    %c42 = arith.constant 42 : index
    %508 = memref.load %arg4[%c42] : memref<96xf32, #tpu.memory_space<smem>>
    %509 = vector.broadcast %508 : f32 to vector<2x128xf32>
    %510 = arith.mulf %509, %214 : vector<2x128xf32>
    %511 = arith.addf %507, %510 : vector<2x128xf32>
    %c43 = arith.constant 43 : index
    %512 = memref.load %arg4[%c43] : memref<96xf32, #tpu.memory_space<smem>>
    %513 = vector.broadcast %512 : f32 to vector<2x128xf32>
    %514 = arith.mulf %513, %216 : vector<2x128xf32>
    %515 = arith.addf %511, %514 : vector<2x128xf32>
    %c44 = arith.constant 44 : index
    %516 = memref.load %arg4[%c44] : memref<96xf32, #tpu.memory_space<smem>>
    %517 = vector.broadcast %516 : f32 to vector<2x128xf32>
    %518 = arith.mulf %517, %218 : vector<2x128xf32>
    %519 = arith.addf %515, %518 : vector<2x128xf32>
    %c45 = arith.constant 45 : index
    %520 = memref.load %arg4[%c45] : memref<96xf32, #tpu.memory_space<smem>>
    %521 = vector.broadcast %520 : f32 to vector<2x128xf32>
    %522 = arith.mulf %521, %220 : vector<2x128xf32>
    %523 = arith.addf %519, %522 : vector<2x128xf32>
    %c46 = arith.constant 46 : index
    %524 = memref.load %arg4[%c46] : memref<96xf32, #tpu.memory_space<smem>>
    %525 = vector.broadcast %524 : f32 to vector<2x128xf32>
    %526 = arith.mulf %525, %222 : vector<2x128xf32>
    %527 = arith.addf %523, %526 : vector<2x128xf32>
    %c47 = arith.constant 47 : index
    %528 = memref.load %arg4[%c47] : memref<96xf32, #tpu.memory_space<smem>>
    %529 = vector.broadcast %528 : f32 to vector<2x128xf32>
    %530 = arith.mulf %529, %224 : vector<2x128xf32>
    %531 = arith.addf %527, %530 : vector<2x128xf32>
    %cst_182 = arith.constant 0.000000e+00 : f32
    %532 = vector.broadcast %cst_182 : f32 to vector<2x128xf32>
    %533 = arith.select %232, %531, %532 : vector<2x128xi1>, vector<2x128xf32>
    %534 = vector.shape_cast %533 : vector<2x128xf32> to vector<1x2x128xf32>
    %cst_183 = arith.constant dense<0.000000e+00> : vector<1xf32>
    %535 = vector.multi_reduction <add>, %534, %cst_183 [1, 2] : vector<1x2x128xf32> to vector<1xf32>
    %536 = vector.shape_cast %535 : vector<1xf32> to vector<1x1x1xf32>
    %537 = vector.extract %536[0, 0, 0] : f32 from vector<1x1x1xf32>
    %538 = arith.mulf %533, %533 : vector<2x128xf32>
    %539 = vector.shape_cast %538 : vector<2x128xf32> to vector<1x2x128xf32>
    %cst_184 = arith.constant dense<0.000000e+00> : vector<1xf32>
    %540 = vector.multi_reduction <add>, %539, %cst_184 [1, 2] : vector<1x2x128xf32> to vector<1xf32>
    %541 = vector.shape_cast %540 : vector<1xf32> to vector<1x1x1xf32>
    %542 = vector.extract %541[0, 0, 0] : f32 from vector<1x1x1xf32>
    %cst_185 = arith.constant 0.00819672085 : f32
    %543 = arith.mulf %537, %cst_185 : f32
    %cst_186 = arith.constant 0.00819672085 : f32
    %544 = arith.mulf %542, %cst_186 : f32
    %545 = arith.mulf %543, %543 : f32
    %546 = arith.subf %544, %545 : f32
    %cst_187 = arith.constant 0.000000e+00 : f32
    %547 = arith.maximumf %546, %cst_187 : f32
    %c3_188 = arith.constant 3 : index
    %548 = memref.load %arg5[%c3_188] : memref<8xf32, #tpu.memory_space<smem>>
    %cst_189 = arith.constant 9.99999974E-6 : f32
    %549 = arith.addf %547, %cst_189 : f32
    %550 = math.rsqrt %549 : f32
    %551 = arith.mulf %548, %550 : f32
    %c3_190 = arith.constant 3 : index
    %552 = memref.load %arg6[%c3_190] : memref<8xf32, #tpu.memory_space<smem>>
    %553 = arith.mulf %543, %551 : f32
    %554 = arith.subf %552, %553 : f32
    %555 = vector.broadcast %551 : f32 to vector<2x128xf32>
    %556 = arith.mulf %531, %555 : vector<2x128xf32>
    %557 = vector.broadcast %554 : f32 to vector<2x128xf32>
    %558 = arith.addf %556, %557 : vector<2x128xf32>
    %cst_191 = arith.constant 0.000000e+00 : f32
    %559 = vector.broadcast %cst_191 : f32 to vector<2x128xf32>
    %560 = arith.maximumf %558, %559 : vector<2x128xf32>
    %c0_192 = arith.constant 0 : index
    %c0_193 = arith.constant 0 : index
    %561 = vector.load %arg9[%c0_192, %c0_193] : memref<2x132xf32, #tpu.memory_space<vmem>>, vector<2x128xf32>
    tpu.vector_store %arg9[%c0_192, %c0_193], %560 {strides = array<i32>} : memref<2x132xf32, #tpu.memory_space<vmem>>, vector<2x128xf32>,
    %c0_194 = arith.constant 0 : index
    %c2_195 = arith.constant 2 : index
    %562 = vector.load %arg9[%c0_194, %c2_195] : memref<2x132xf32, #tpu.memory_space<vmem>>, vector<2x128xf32>
    %563 = arith.addf %560, %562 : vector<2x128xf32>
    %cst_196 = arith.constant 5.000000e-01 : f32
    %564 = vector.broadcast %cst_196 : f32 to vector<2x128xf32>
    %565 = arith.mulf %563, %564 : vector<2x128xf32>
    %c3_197 = arith.constant 3 : index
    %c0_198 = arith.constant 0 : index
    %c0_199 = arith.constant 0 : index
    %566 = vector.load %arg7[%c3_197, %c0_198, %c0_199] : memref<8x2x128xf32, #tpu.memory_space<vmem>>, vector<1x2x128xf32>
    %567 = vector.shape_cast %566 : vector<1x2x128xf32> to vector<2x128xf32>
    %568 = vector.shape_cast %565 : vector<2x128xf32> to vector<1x2x128xf32>
    tpu.vector_store %arg7[%c3_197, %c0_198, %c0_199], %568 {strides = array<i32>} : memref<8x2x128xf32, #tpu.memory_space<vmem>>, vector<1x2x128xf32>,
    %c48 = arith.constant 48 : index
    %569 = memref.load %arg4[%c48] : memref<96xf32, #tpu.memory_space<smem>>
    %570 = vector.broadcast %569 : f32 to vector<2x128xf32>
    %571 = arith.mulf %570, %202 : vector<2x128xf32>
    %c49 = arith.constant 49 : index
    %572 = memref.load %arg4[%c49] : memref<96xf32, #tpu.memory_space<smem>>
    %573 = vector.broadcast %572 : f32 to vector<2x128xf32>
    %574 = arith.mulf %573, %204 : vector<2x128xf32>
    %575 = arith.addf %571, %574 : vector<2x128xf32>
    %c50 = arith.constant 50 : index
    %576 = memref.load %arg4[%c50] : memref<96xf32, #tpu.memory_space<smem>>
    %577 = vector.broadcast %576 : f32 to vector<2x128xf32>
    %578 = arith.mulf %577, %206 : vector<2x128xf32>
    %579 = arith.addf %575, %578 : vector<2x128xf32>
    %c51 = arith.constant 51 : index
    %580 = memref.load %arg4[%c51] : memref<96xf32, #tpu.memory_space<smem>>
    %581 = vector.broadcast %580 : f32 to vector<2x128xf32>
    %582 = arith.mulf %581, %208 : vector<2x128xf32>
    %583 = arith.addf %579, %582 : vector<2x128xf32>
    %c52 = arith.constant 52 : index
    %584 = memref.load %arg4[%c52] : memref<96xf32, #tpu.memory_space<smem>>
    %585 = vector.broadcast %584 : f32 to vector<2x128xf32>
    %586 = arith.mulf %585, %210 : vector<2x128xf32>
    %587 = arith.addf %583, %586 : vector<2x128xf32>
    %c53 = arith.constant 53 : index
    %588 = memref.load %arg4[%c53] : memref<96xf32, #tpu.memory_space<smem>>
    %589 = vector.broadcast %588 : f32 to vector<2x128xf32>
    %590 = arith.mulf %589, %212 : vector<2x128xf32>
    %591 = arith.addf %587, %590 : vector<2x128xf32>
    %c54 = arith.constant 54 : index
    %592 = memref.load %arg4[%c54] : memref<96xf32, #tpu.memory_space<smem>>
    %593 = vector.broadcast %592 : f32 to vector<2x128xf32>
    %594 = arith.mulf %593, %214 : vector<2x128xf32>
    %595 = arith.addf %591, %594 : vector<2x128xf32>
    %c55 = arith.constant 55 : index
    %596 = memref.load %arg4[%c55] : memref<96xf32, #tpu.memory_space<smem>>
    %597 = vector.broadcast %596 : f32 to vector<2x128xf32>
    %598 = arith.mulf %597, %216 : vector<2x128xf32>
    %599 = arith.addf %595, %598 : vector<2x128xf32>
    %c56 = arith.constant 56 : index
    %600 = memref.load %arg4[%c56] : memref<96xf32, #tpu.memory_space<smem>>
    %601 = vector.broadcast %600 : f32 to vector<2x128xf32>
    %602 = arith.mulf %601, %218 : vector<2x128xf32>
    %603 = arith.addf %599, %602 : vector<2x128xf32>
    %c57 = arith.constant 57 : index
    %604 = memref.load %arg4[%c57] : memref<96xf32, #tpu.memory_space<smem>>
    %605 = vector.broadcast %604 : f32 to vector<2x128xf32>
    %606 = arith.mulf %605, %220 : vector<2x128xf32>
    %607 = arith.addf %603, %606 : vector<2x128xf32>
    %c58 = arith.constant 58 : index
    %608 = memref.load %arg4[%c58] : memref<96xf32, #tpu.memory_space<smem>>
    %609 = vector.broadcast %608 : f32 to vector<2x128xf32>
    %610 = arith.mulf %609, %222 : vector<2x128xf32>
    %611 = arith.addf %607, %610 : vector<2x128xf32>
    %c59 = arith.constant 59 : index
    %612 = memref.load %arg4[%c59] : memref<96xf32, #tpu.memory_space<smem>>
    %613 = vector.broadcast %612 : f32 to vector<2x128xf32>
    %614 = arith.mulf %613, %224 : vector<2x128xf32>
    %615 = arith.addf %611, %614 : vector<2x128xf32>
    %cst_200 = arith.constant 0.000000e+00 : f32
    %616 = vector.broadcast %cst_200 : f32 to vector<2x128xf32>
    %617 = arith.select %232, %615, %616 : vector<2x128xi1>, vector<2x128xf32>
    %618 = vector.shape_cast %617 : vector<2x128xf32> to vector<1x2x128xf32>
    %cst_201 = arith.constant dense<0.000000e+00> : vector<1xf32>
    %619 = vector.multi_reduction <add>, %618, %cst_201 [1, 2] : vector<1x2x128xf32> to vector<1xf32>
    %620 = vector.shape_cast %619 : vector<1xf32> to vector<1x1x1xf32>
    %621 = vector.extract %620[0, 0, 0] : f32 from vector<1x1x1xf32>
    %622 = arith.mulf %617, %617 : vector<2x128xf32>
    %623 = vector.shape_cast %622 : vector<2x128xf32> to vector<1x2x128xf32>
    %cst_202 = arith.constant dense<0.000000e+00> : vector<1xf32>
    %624 = vector.multi_reduction <add>, %623, %cst_202 [1, 2] : vector<1x2x128xf32> to vector<1xf32>
    %625 = vector.shape_cast %624 : vector<1xf32> to vector<1x1x1xf32>
    %626 = vector.extract %625[0, 0, 0] : f32 from vector<1x1x1xf32>
    %cst_203 = arith.constant 0.00819672085 : f32
    %627 = arith.mulf %621, %cst_203 : f32
    %cst_204 = arith.constant 0.00819672085 : f32
    %628 = arith.mulf %626, %cst_204 : f32
    %629 = arith.mulf %627, %627 : f32
    %630 = arith.subf %628, %629 : f32
    %cst_205 = arith.constant 0.000000e+00 : f32
    %631 = arith.maximumf %630, %cst_205 : f32
    %c4_206 = arith.constant 4 : index
    %632 = memref.load %arg5[%c4_206] : memref<8xf32, #tpu.memory_space<smem>>
    %cst_207 = arith.constant 9.99999974E-6 : f32
    %633 = arith.addf %631, %cst_207 : f32
    %634 = math.rsqrt %633 : f32
    %635 = arith.mulf %632, %634 : f32
    %c4_208 = arith.constant 4 : index
    %636 = memref.load %arg6[%c4_208] : memref<8xf32, #tpu.memory_space<smem>>
    %637 = arith.mulf %627, %635 : f32
    %638 = arith.subf %636, %637 : f32
    %639 = vector.broadcast %635 : f32 to vector<2x128xf32>
    %640 = arith.mulf %615, %639 : vector<2x128xf32>
    %641 = vector.broadcast %638 : f32 to vector<2x128xf32>
    %642 = arith.addf %640, %641 : vector<2x128xf32>
    %cst_209 = arith.constant 0.000000e+00 : f32
    %643 = vector.broadcast %cst_209 : f32 to vector<2x128xf32>
    %644 = arith.maximumf %642, %643 : vector<2x128xf32>
    %c0_210 = arith.constant 0 : index
    %c0_211 = arith.constant 0 : index
    %645 = vector.load %arg9[%c0_210, %c0_211] : memref<2x132xf32, #tpu.memory_space<vmem>>, vector<2x128xf32>
    tpu.vector_store %arg9[%c0_210, %c0_211], %644 {strides = array<i32>} : memref<2x132xf32, #tpu.memory_space<vmem>>, vector<2x128xf32>,
    %c0_212 = arith.constant 0 : index
    %c2_213 = arith.constant 2 : index
    %646 = vector.load %arg9[%c0_212, %c2_213] : memref<2x132xf32, #tpu.memory_space<vmem>>, vector<2x128xf32>
    %647 = arith.addf %644, %646 : vector<2x128xf32>
    %cst_214 = arith.constant 5.000000e-01 : f32
    %648 = vector.broadcast %cst_214 : f32 to vector<2x128xf32>
    %649 = arith.mulf %647, %648 : vector<2x128xf32>
    %c4_215 = arith.constant 4 : index
    %c0_216 = arith.constant 0 : index
    %c0_217 = arith.constant 0 : index
    %650 = vector.load %arg7[%c4_215, %c0_216, %c0_217] : memref<8x2x128xf32, #tpu.memory_space<vmem>>, vector<1x2x128xf32>
    %651 = vector.shape_cast %650 : vector<1x2x128xf32> to vector<2x128xf32>
    %652 = vector.shape_cast %649 : vector<2x128xf32> to vector<1x2x128xf32>
    tpu.vector_store %arg7[%c4_215, %c0_216, %c0_217], %652 {strides = array<i32>} : memref<8x2x128xf32, #tpu.memory_space<vmem>>, vector<1x2x128xf32>,
    %c60 = arith.constant 60 : index
    %653 = memref.load %arg4[%c60] : memref<96xf32, #tpu.memory_space<smem>>
    %654 = vector.broadcast %653 : f32 to vector<2x128xf32>
    %655 = arith.mulf %654, %202 : vector<2x128xf32>
    %c61 = arith.constant 61 : index
    %656 = memref.load %arg4[%c61] : memref<96xf32, #tpu.memory_space<smem>>
    %657 = vector.broadcast %656 : f32 to vector<2x128xf32>
    %658 = arith.mulf %657, %204 : vector<2x128xf32>
    %659 = arith.addf %655, %658 : vector<2x128xf32>
    %c62 = arith.constant 62 : index
    %660 = memref.load %arg4[%c62] : memref<96xf32, #tpu.memory_space<smem>>
    %661 = vector.broadcast %660 : f32 to vector<2x128xf32>
    %662 = arith.mulf %661, %206 : vector<2x128xf32>
    %663 = arith.addf %659, %662 : vector<2x128xf32>
    %c63 = arith.constant 63 : index
    %664 = memref.load %arg4[%c63] : memref<96xf32, #tpu.memory_space<smem>>
    %665 = vector.broadcast %664 : f32 to vector<2x128xf32>
    %666 = arith.mulf %665, %208 : vector<2x128xf32>
    %667 = arith.addf %663, %666 : vector<2x128xf32>
    %c64 = arith.constant 64 : index
    %668 = memref.load %arg4[%c64] : memref<96xf32, #tpu.memory_space<smem>>
    %669 = vector.broadcast %668 : f32 to vector<2x128xf32>
    %670 = arith.mulf %669, %210 : vector<2x128xf32>
    %671 = arith.addf %667, %670 : vector<2x128xf32>
    %c65 = arith.constant 65 : index
    %672 = memref.load %arg4[%c65] : memref<96xf32, #tpu.memory_space<smem>>
    %673 = vector.broadcast %672 : f32 to vector<2x128xf32>
    %674 = arith.mulf %673, %212 : vector<2x128xf32>
    %675 = arith.addf %671, %674 : vector<2x128xf32>
    %c66 = arith.constant 66 : index
    %676 = memref.load %arg4[%c66] : memref<96xf32, #tpu.memory_space<smem>>
    %677 = vector.broadcast %676 : f32 to vector<2x128xf32>
    %678 = arith.mulf %677, %214 : vector<2x128xf32>
    %679 = arith.addf %675, %678 : vector<2x128xf32>
    %c67 = arith.constant 67 : index
    %680 = memref.load %arg4[%c67] : memref<96xf32, #tpu.memory_space<smem>>
    %681 = vector.broadcast %680 : f32 to vector<2x128xf32>
    %682 = arith.mulf %681, %216 : vector<2x128xf32>
    %683 = arith.addf %679, %682 : vector<2x128xf32>
    %c68 = arith.constant 68 : index
    %684 = memref.load %arg4[%c68] : memref<96xf32, #tpu.memory_space<smem>>
    %685 = vector.broadcast %684 : f32 to vector<2x128xf32>
    %686 = arith.mulf %685, %218 : vector<2x128xf32>
    %687 = arith.addf %683, %686 : vector<2x128xf32>
    %c69 = arith.constant 69 : index
    %688 = memref.load %arg4[%c69] : memref<96xf32, #tpu.memory_space<smem>>
    %689 = vector.broadcast %688 : f32 to vector<2x128xf32>
    %690 = arith.mulf %689, %220 : vector<2x128xf32>
    %691 = arith.addf %687, %690 : vector<2x128xf32>
    %c70 = arith.constant 70 : index
    %692 = memref.load %arg4[%c70] : memref<96xf32, #tpu.memory_space<smem>>
    %693 = vector.broadcast %692 : f32 to vector<2x128xf32>
    %694 = arith.mulf %693, %222 : vector<2x128xf32>
    %695 = arith.addf %691, %694 : vector<2x128xf32>
    %c71 = arith.constant 71 : index
    %696 = memref.load %arg4[%c71] : memref<96xf32, #tpu.memory_space<smem>>
    %697 = vector.broadcast %696 : f32 to vector<2x128xf32>
    %698 = arith.mulf %697, %224 : vector<2x128xf32>
    %699 = arith.addf %695, %698 : vector<2x128xf32>
    %cst_218 = arith.constant 0.000000e+00 : f32
    %700 = vector.broadcast %cst_218 : f32 to vector<2x128xf32>
    %701 = arith.select %232, %699, %700 : vector<2x128xi1>, vector<2x128xf32>
    %702 = vector.shape_cast %701 : vector<2x128xf32> to vector<1x2x128xf32>
    %cst_219 = arith.constant dense<0.000000e+00> : vector<1xf32>
    %703 = vector.multi_reduction <add>, %702, %cst_219 [1, 2] : vector<1x2x128xf32> to vector<1xf32>
    %704 = vector.shape_cast %703 : vector<1xf32> to vector<1x1x1xf32>
    %705 = vector.extract %704[0, 0, 0] : f32 from vector<1x1x1xf32>
    %706 = arith.mulf %701, %701 : vector<2x128xf32>
    %707 = vector.shape_cast %706 : vector<2x128xf32> to vector<1x2x128xf32>
    %cst_220 = arith.constant dense<0.000000e+00> : vector<1xf32>
    %708 = vector.multi_reduction <add>, %707, %cst_220 [1, 2] : vector<1x2x128xf32> to vector<1xf32>
    %709 = vector.shape_cast %708 : vector<1xf32> to vector<1x1x1xf32>
    %710 = vector.extract %709[0, 0, 0] : f32 from vector<1x1x1xf32>
    %cst_221 = arith.constant 0.00819672085 : f32
    %711 = arith.mulf %705, %cst_221 : f32
    %cst_222 = arith.constant 0.00819672085 : f32
    %712 = arith.mulf %710, %cst_222 : f32
    %713 = arith.mulf %711, %711 : f32
    %714 = arith.subf %712, %713 : f32
    %cst_223 = arith.constant 0.000000e+00 : f32
    %715 = arith.maximumf %714, %cst_223 : f32
    %c5_224 = arith.constant 5 : index
    %716 = memref.load %arg5[%c5_224] : memref<8xf32, #tpu.memory_space<smem>>
    %cst_225 = arith.constant 9.99999974E-6 : f32
    %717 = arith.addf %715, %cst_225 : f32
    %718 = math.rsqrt %717 : f32
    %719 = arith.mulf %716, %718 : f32
    %c5_226 = arith.constant 5 : index
    %720 = memref.load %arg6[%c5_226] : memref<8xf32, #tpu.memory_space<smem>>
    %721 = arith.mulf %711, %719 : f32
    %722 = arith.subf %720, %721 : f32
    %723 = vector.broadcast %719 : f32 to vector<2x128xf32>
    %724 = arith.mulf %699, %723 : vector<2x128xf32>
    %725 = vector.broadcast %722 : f32 to vector<2x128xf32>
    %726 = arith.addf %724, %725 : vector<2x128xf32>
    %cst_227 = arith.constant 0.000000e+00 : f32
    %727 = vector.broadcast %cst_227 : f32 to vector<2x128xf32>
    %728 = arith.maximumf %726, %727 : vector<2x128xf32>
    %c0_228 = arith.constant 0 : index
    %c0_229 = arith.constant 0 : index
    %729 = vector.load %arg9[%c0_228, %c0_229] : memref<2x132xf32, #tpu.memory_space<vmem>>, vector<2x128xf32>
    tpu.vector_store %arg9[%c0_228, %c0_229], %728 {strides = array<i32>} : memref<2x132xf32, #tpu.memory_space<vmem>>, vector<2x128xf32>,
    %c0_230 = arith.constant 0 : index
    %c2_231 = arith.constant 2 : index
    %730 = vector.load %arg9[%c0_230, %c2_231] : memref<2x132xf32, #tpu.memory_space<vmem>>, vector<2x128xf32>
    %731 = arith.addf %728, %730 : vector<2x128xf32>
    %cst_232 = arith.constant 5.000000e-01 : f32
    %732 = vector.broadcast %cst_232 : f32 to vector<2x128xf32>
    %733 = arith.mulf %731, %732 : vector<2x128xf32>
    %c5_233 = arith.constant 5 : index
    %c0_234 = arith.constant 0 : index
    %c0_235 = arith.constant 0 : index
    %734 = vector.load %arg7[%c5_233, %c0_234, %c0_235] : memref<8x2x128xf32, #tpu.memory_space<vmem>>, vector<1x2x128xf32>
    %735 = vector.shape_cast %734 : vector<1x2x128xf32> to vector<2x128xf32>
    %736 = vector.shape_cast %733 : vector<2x128xf32> to vector<1x2x128xf32>
    tpu.vector_store %arg7[%c5_233, %c0_234, %c0_235], %736 {strides = array<i32>} : memref<8x2x128xf32, #tpu.memory_space<vmem>>, vector<1x2x128xf32>,
    %c72 = arith.constant 72 : index
    %737 = memref.load %arg4[%c72] : memref<96xf32, #tpu.memory_space<smem>>
    %738 = vector.broadcast %737 : f32 to vector<2x128xf32>
    %739 = arith.mulf %738, %202 : vector<2x128xf32>
    %c73 = arith.constant 73 : index
    %740 = memref.load %arg4[%c73] : memref<96xf32, #tpu.memory_space<smem>>
    %741 = vector.broadcast %740 : f32 to vector<2x128xf32>
    %742 = arith.mulf %741, %204 : vector<2x128xf32>
    %743 = arith.addf %739, %742 : vector<2x128xf32>
    %c74 = arith.constant 74 : index
    %744 = memref.load %arg4[%c74] : memref<96xf32, #tpu.memory_space<smem>>
    %745 = vector.broadcast %744 : f32 to vector<2x128xf32>
    %746 = arith.mulf %745, %206 : vector<2x128xf32>
    %747 = arith.addf %743, %746 : vector<2x128xf32>
    %c75 = arith.constant 75 : index
    %748 = memref.load %arg4[%c75] : memref<96xf32, #tpu.memory_space<smem>>
    %749 = vector.broadcast %748 : f32 to vector<2x128xf32>
    %750 = arith.mulf %749, %208 : vector<2x128xf32>
    %751 = arith.addf %747, %750 : vector<2x128xf32>
    %c76 = arith.constant 76 : index
    %752 = memref.load %arg4[%c76] : memref<96xf32, #tpu.memory_space<smem>>
    %753 = vector.broadcast %752 : f32 to vector<2x128xf32>
    %754 = arith.mulf %753, %210 : vector<2x128xf32>
    %755 = arith.addf %751, %754 : vector<2x128xf32>
    %c77 = arith.constant 77 : index
    %756 = memref.load %arg4[%c77] : memref<96xf32, #tpu.memory_space<smem>>
    %757 = vector.broadcast %756 : f32 to vector<2x128xf32>
    %758 = arith.mulf %757, %212 : vector<2x128xf32>
    %759 = arith.addf %755, %758 : vector<2x128xf32>
    %c78 = arith.constant 78 : index
    %760 = memref.load %arg4[%c78] : memref<96xf32, #tpu.memory_space<smem>>
    %761 = vector.broadcast %760 : f32 to vector<2x128xf32>
    %762 = arith.mulf %761, %214 : vector<2x128xf32>
    %763 = arith.addf %759, %762 : vector<2x128xf32>
    %c79 = arith.constant 79 : index
    %764 = memref.load %arg4[%c79] : memref<96xf32, #tpu.memory_space<smem>>
    %765 = vector.broadcast %764 : f32 to vector<2x128xf32>
    %766 = arith.mulf %765, %216 : vector<2x128xf32>
    %767 = arith.addf %763, %766 : vector<2x128xf32>
    %c80 = arith.constant 80 : index
    %768 = memref.load %arg4[%c80] : memref<96xf32, #tpu.memory_space<smem>>
    %769 = vector.broadcast %768 : f32 to vector<2x128xf32>
    %770 = arith.mulf %769, %218 : vector<2x128xf32>
    %771 = arith.addf %767, %770 : vector<2x128xf32>
    %c81 = arith.constant 81 : index
    %772 = memref.load %arg4[%c81] : memref<96xf32, #tpu.memory_space<smem>>
    %773 = vector.broadcast %772 : f32 to vector<2x128xf32>
    %774 = arith.mulf %773, %220 : vector<2x128xf32>
    %775 = arith.addf %771, %774 : vector<2x128xf32>
    %c82 = arith.constant 82 : index
    %776 = memref.load %arg4[%c82] : memref<96xf32, #tpu.memory_space<smem>>
    %777 = vector.broadcast %776 : f32 to vector<2x128xf32>
    %778 = arith.mulf %777, %222 : vector<2x128xf32>
    %779 = arith.addf %775, %778 : vector<2x128xf32>
    %c83 = arith.constant 83 : index
    %780 = memref.load %arg4[%c83] : memref<96xf32, #tpu.memory_space<smem>>
    %781 = vector.broadcast %780 : f32 to vector<2x128xf32>
    %782 = arith.mulf %781, %224 : vector<2x128xf32>
    %783 = arith.addf %779, %782 : vector<2x128xf32>
    %cst_236 = arith.constant 0.000000e+00 : f32
    %784 = vector.broadcast %cst_236 : f32 to vector<2x128xf32>
    %785 = arith.select %232, %783, %784 : vector<2x128xi1>, vector<2x128xf32>
    %786 = vector.shape_cast %785 : vector<2x128xf32> to vector<1x2x128xf32>
    %cst_237 = arith.constant dense<0.000000e+00> : vector<1xf32>
    %787 = vector.multi_reduction <add>, %786, %cst_237 [1, 2] : vector<1x2x128xf32> to vector<1xf32>
    %788 = vector.shape_cast %787 : vector<1xf32> to vector<1x1x1xf32>
    %789 = vector.extract %788[0, 0, 0] : f32 from vector<1x1x1xf32>
    %790 = arith.mulf %785, %785 : vector<2x128xf32>
    %791 = vector.shape_cast %790 : vector<2x128xf32> to vector<1x2x128xf32>
    %cst_238 = arith.constant dense<0.000000e+00> : vector<1xf32>
    %792 = vector.multi_reduction <add>, %791, %cst_238 [1, 2] : vector<1x2x128xf32> to vector<1xf32>
    %793 = vector.shape_cast %792 : vector<1xf32> to vector<1x1x1xf32>
    %794 = vector.extract %793[0, 0, 0] : f32 from vector<1x1x1xf32>
    %cst_239 = arith.constant 0.00819672085 : f32
    %795 = arith.mulf %789, %cst_239 : f32
    %cst_240 = arith.constant 0.00819672085 : f32
    %796 = arith.mulf %794, %cst_240 : f32
    %797 = arith.mulf %795, %795 : f32
    %798 = arith.subf %796, %797 : f32
    %cst_241 = arith.constant 0.000000e+00 : f32
    %799 = arith.maximumf %798, %cst_241 : f32
    %c6_242 = arith.constant 6 : index
    %800 = memref.load %arg5[%c6_242] : memref<8xf32, #tpu.memory_space<smem>>
    %cst_243 = arith.constant 9.99999974E-6 : f32
    %801 = arith.addf %799, %cst_243 : f32
    %802 = math.rsqrt %801 : f32
    %803 = arith.mulf %800, %802 : f32
    %c6_244 = arith.constant 6 : index
    %804 = memref.load %arg6[%c6_244] : memref<8xf32, #tpu.memory_space<smem>>
    %805 = arith.mulf %795, %803 : f32
    %806 = arith.subf %804, %805 : f32
    %807 = vector.broadcast %803 : f32 to vector<2x128xf32>
    %808 = arith.mulf %783, %807 : vector<2x128xf32>
    %809 = vector.broadcast %806 : f32 to vector<2x128xf32>
    %810 = arith.addf %808, %809 : vector<2x128xf32>
    %cst_245 = arith.constant 0.000000e+00 : f32
    %811 = vector.broadcast %cst_245 : f32 to vector<2x128xf32>
    %812 = arith.maximumf %810, %811 : vector<2x128xf32>
    %c0_246 = arith.constant 0 : index
    %c0_247 = arith.constant 0 : index
    %813 = vector.load %arg9[%c0_246, %c0_247] : memref<2x132xf32, #tpu.memory_space<vmem>>, vector<2x128xf32>
    tpu.vector_store %arg9[%c0_246, %c0_247], %812 {strides = array<i32>} : memref<2x132xf32, #tpu.memory_space<vmem>>, vector<2x128xf32>,
    %c0_248 = arith.constant 0 : index
    %c2_249 = arith.constant 2 : index
    %814 = vector.load %arg9[%c0_248, %c2_249] : memref<2x132xf32, #tpu.memory_space<vmem>>, vector<2x128xf32>
    %815 = arith.addf %812, %814 : vector<2x128xf32>
    %cst_250 = arith.constant 5.000000e-01 : f32
    %816 = vector.broadcast %cst_250 : f32 to vector<2x128xf32>
    %817 = arith.mulf %815, %816 : vector<2x128xf32>
    %c6_251 = arith.constant 6 : index
    %c0_252 = arith.constant 0 : index
    %c0_253 = arith.constant 0 : index
    %818 = vector.load %arg7[%c6_251, %c0_252, %c0_253] : memref<8x2x128xf32, #tpu.memory_space<vmem>>, vector<1x2x128xf32>
    %819 = vector.shape_cast %818 : vector<1x2x128xf32> to vector<2x128xf32>
    %820 = vector.shape_cast %817 : vector<2x128xf32> to vector<1x2x128xf32>
    tpu.vector_store %arg7[%c6_251, %c0_252, %c0_253], %820 {strides = array<i32>} : memref<8x2x128xf32, #tpu.memory_space<vmem>>, vector<1x2x128xf32>,
    %c84 = arith.constant 84 : index
    %821 = memref.load %arg4[%c84] : memref<96xf32, #tpu.memory_space<smem>>
    %822 = vector.broadcast %821 : f32 to vector<2x128xf32>
    %823 = arith.mulf %822, %202 : vector<2x128xf32>
    %c85 = arith.constant 85 : index
    %824 = memref.load %arg4[%c85] : memref<96xf32, #tpu.memory_space<smem>>
    %825 = vector.broadcast %824 : f32 to vector<2x128xf32>
    %826 = arith.mulf %825, %204 : vector<2x128xf32>
    %827 = arith.addf %823, %826 : vector<2x128xf32>
    %c86 = arith.constant 86 : index
    %828 = memref.load %arg4[%c86] : memref<96xf32, #tpu.memory_space<smem>>
    %829 = vector.broadcast %828 : f32 to vector<2x128xf32>
    %830 = arith.mulf %829, %206 : vector<2x128xf32>
    %831 = arith.addf %827, %830 : vector<2x128xf32>
    %c87 = arith.constant 87 : index
    %832 = memref.load %arg4[%c87] : memref<96xf32, #tpu.memory_space<smem>>
    %833 = vector.broadcast %832 : f32 to vector<2x128xf32>
    %834 = arith.mulf %833, %208 : vector<2x128xf32>
    %835 = arith.addf %831, %834 : vector<2x128xf32>
    %c88 = arith.constant 88 : index
    %836 = memref.load %arg4[%c88] : memref<96xf32, #tpu.memory_space<smem>>
    %837 = vector.broadcast %836 : f32 to vector<2x128xf32>
    %838 = arith.mulf %837, %210 : vector<2x128xf32>
    %839 = arith.addf %835, %838 : vector<2x128xf32>
    %c89 = arith.constant 89 : index
    %840 = memref.load %arg4[%c89] : memref<96xf32, #tpu.memory_space<smem>>
    %841 = vector.broadcast %840 : f32 to vector<2x128xf32>
    %842 = arith.mulf %841, %212 : vector<2x128xf32>
    %843 = arith.addf %839, %842 : vector<2x128xf32>
    %c90 = arith.constant 90 : index
    %844 = memref.load %arg4[%c90] : memref<96xf32, #tpu.memory_space<smem>>
    %845 = vector.broadcast %844 : f32 to vector<2x128xf32>
    %846 = arith.mulf %845, %214 : vector<2x128xf32>
    %847 = arith.addf %843, %846 : vector<2x128xf32>
    %c91 = arith.constant 91 : index
    %848 = memref.load %arg4[%c91] : memref<96xf32, #tpu.memory_space<smem>>
    %849 = vector.broadcast %848 : f32 to vector<2x128xf32>
    %850 = arith.mulf %849, %216 : vector<2x128xf32>
    %851 = arith.addf %847, %850 : vector<2x128xf32>
    %c92 = arith.constant 92 : index
    %852 = memref.load %arg4[%c92] : memref<96xf32, #tpu.memory_space<smem>>
    %853 = vector.broadcast %852 : f32 to vector<2x128xf32>
    %854 = arith.mulf %853, %218 : vector<2x128xf32>
    %855 = arith.addf %851, %854 : vector<2x128xf32>
    %c93 = arith.constant 93 : index
    %856 = memref.load %arg4[%c93] : memref<96xf32, #tpu.memory_space<smem>>
    %857 = vector.broadcast %856 : f32 to vector<2x128xf32>
    %858 = arith.mulf %857, %220 : vector<2x128xf32>
    %859 = arith.addf %855, %858 : vector<2x128xf32>
    %c94 = arith.constant 94 : index
    %860 = memref.load %arg4[%c94] : memref<96xf32, #tpu.memory_space<smem>>
    %861 = vector.broadcast %860 : f32 to vector<2x128xf32>
    %862 = arith.mulf %861, %222 : vector<2x128xf32>
    %863 = arith.addf %859, %862 : vector<2x128xf32>
    %c95 = arith.constant 95 : index
    %864 = memref.load %arg4[%c95] : memref<96xf32, #tpu.memory_space<smem>>
    %865 = vector.broadcast %864 : f32 to vector<2x128xf32>
    %866 = arith.mulf %865, %224 : vector<2x128xf32>
    %867 = arith.addf %863, %866 : vector<2x128xf32>
    %cst_254 = arith.constant 0.000000e+00 : f32
    %868 = vector.broadcast %cst_254 : f32 to vector<2x128xf32>
    %869 = arith.select %232, %867, %868 : vector<2x128xi1>, vector<2x128xf32>
    %870 = vector.shape_cast %869 : vector<2x128xf32> to vector<1x2x128xf32>
    %cst_255 = arith.constant dense<0.000000e+00> : vector<1xf32>
    %871 = vector.multi_reduction <add>, %870, %cst_255 [1, 2] : vector<1x2x128xf32> to vector<1xf32>
    %872 = vector.shape_cast %871 : vector<1xf32> to vector<1x1x1xf32>
    %873 = vector.extract %872[0, 0, 0] : f32 from vector<1x1x1xf32>
    %874 = arith.mulf %869, %869 : vector<2x128xf32>
    %875 = vector.shape_cast %874 : vector<2x128xf32> to vector<1x2x128xf32>
    %cst_256 = arith.constant dense<0.000000e+00> : vector<1xf32>
    %876 = vector.multi_reduction <add>, %875, %cst_256 [1, 2] : vector<1x2x128xf32> to vector<1xf32>
    %877 = vector.shape_cast %876 : vector<1xf32> to vector<1x1x1xf32>
    %878 = vector.extract %877[0, 0, 0] : f32 from vector<1x1x1xf32>
    %cst_257 = arith.constant 0.00819672085 : f32
    %879 = arith.mulf %873, %cst_257 : f32
    %cst_258 = arith.constant 0.00819672085 : f32
    %880 = arith.mulf %878, %cst_258 : f32
    %881 = arith.mulf %879, %879 : f32
    %882 = arith.subf %880, %881 : f32
    %cst_259 = arith.constant 0.000000e+00 : f32
    %883 = arith.maximumf %882, %cst_259 : f32
    %c7_260 = arith.constant 7 : index
    %884 = memref.load %arg5[%c7_260] : memref<8xf32, #tpu.memory_space<smem>>
    %cst_261 = arith.constant 9.99999974E-6 : f32
    %885 = arith.addf %883, %cst_261 : f32
    %886 = math.rsqrt %885 : f32
    %887 = arith.mulf %884, %886 : f32
    %c7_262 = arith.constant 7 : index
    %888 = memref.load %arg6[%c7_262] : memref<8xf32, #tpu.memory_space<smem>>
    %889 = arith.mulf %879, %887 : f32
    %890 = arith.subf %888, %889 : f32
    %891 = vector.broadcast %887 : f32 to vector<2x128xf32>
    %892 = arith.mulf %867, %891 : vector<2x128xf32>
    %893 = vector.broadcast %890 : f32 to vector<2x128xf32>
    %894 = arith.addf %892, %893 : vector<2x128xf32>
    %cst_263 = arith.constant 0.000000e+00 : f32
    %895 = vector.broadcast %cst_263 : f32 to vector<2x128xf32>
    %896 = arith.maximumf %894, %895 : vector<2x128xf32>
    %c0_264 = arith.constant 0 : index
    %c0_265 = arith.constant 0 : index
    %897 = vector.load %arg9[%c0_264, %c0_265] : memref<2x132xf32, #tpu.memory_space<vmem>>, vector<2x128xf32>
    tpu.vector_store %arg9[%c0_264, %c0_265], %896 {strides = array<i32>} : memref<2x132xf32, #tpu.memory_space<vmem>>, vector<2x128xf32>,
    %c0_266 = arith.constant 0 : index
    %c2_267 = arith.constant 2 : index
    %898 = vector.load %arg9[%c0_266, %c2_267] : memref<2x132xf32, #tpu.memory_space<vmem>>, vector<2x128xf32>
    %899 = arith.addf %896, %898 : vector<2x128xf32>
    %cst_268 = arith.constant 5.000000e-01 : f32
    %900 = vector.broadcast %cst_268 : f32 to vector<2x128xf32>
    %901 = arith.mulf %899, %900 : vector<2x128xf32>
    %c7_269 = arith.constant 7 : index
    %c0_270 = arith.constant 0 : index
    %c0_271 = arith.constant 0 : index
    %902 = vector.load %arg7[%c7_269, %c0_270, %c0_271] : memref<8x2x128xf32, #tpu.memory_space<vmem>>, vector<1x2x128xf32>
    %903 = vector.shape_cast %902 : vector<1x2x128xf32> to vector<2x128xf32>
    %904 = vector.shape_cast %901 : vector<2x128xf32> to vector<1x2x128xf32>
    tpu.vector_store %arg7[%c7_269, %c0_270, %c0_271], %904 {strides = array<i32>} : memref<8x2x128xf32, #tpu.memory_space<vmem>>, vector<1x2x128xf32>,
    return
  }
}

</mosaic_0001>

<llo_original>
// kernel: tpu_custom_call.1
$region0: #{tpu_custom_call.1}
  #allocation0 [shape = 'u32[]', space=smem, size = 0x4, offset = 0x4, fixed_abs, tag = 'smem constant byte address 0x4 - core index']
  #allocation1 [shape = 'u32[144,128]{1,0:T(1,128)}', space=vmem, size = 0x12000, scoped, tag = 'internal scratch']
  #allocation2 [shape = 'f32[4,2,132]{2,1,0:T(2,128)}', space=vmem, size = 0x2000, scoped, tag = 'scratch operand']
  #allocation3 [shape = 'f32[2,132]{1,0:T(2,128)}', space=vmem, size = 0x800, scoped, tag = 'scratch operand']
  %s0 = inlined_call_operand.hbm [shape: f32[1,2,132], index: 0, kind: input, shape index: {}]
  %s1 = inlined_call_operand.vmem [shape: f32[12], index: 1, kind: input, shape index: {}]
  %s2 = inlined_call_operand.vmem [shape: f32[4], index: 2, kind: input, shape index: {}]
  %s3 = inlined_call_operand.vmem [shape: f32[4], index: 3, kind: input, shape index: {}]
  %s4 = inlined_call_operand.vmem [shape: f32[96], index: 4, kind: input, shape index: {}]
  %s5 = inlined_call_operand.vmem [shape: f32[8], index: 5, kind: input, shape index: {}]
  %s6 = inlined_call_operand.vmem [shape: f32[8], index: 6, kind: input, shape index: {}]
  %s7 = inlined_call_operand.hbm [shape: f32[8,2,128], index: 7, kind: output, shape index: {}]
  %s8 = sld [smem:[#allocation0]]
  $region66: #{tpu_custom_call.1} parent=0
    _
  %s10 = ssub.s32 1, %s8
  %s11 = scalar_select 0, %s10, %s8
  $region1: #{tpu_custom_call.1} parent=0
    #allocation4 [shape = 'u8[2048]{0}', space=vmem, size = 0x800, scoped, tag = 'input window, operand 0, single buffered']
    #allocation5 [shape = 's32[1]{0}', space=sflag, size = 0x4, scoped, tag = 'scoped memory for tpu_custom_call.1']
    #allocation6 [shape = 's32[1]{0}', space=sflag, size = 0x4, scoped, tag = 'scoped memory for tpu_custom_call.1']
    #allocation7 [shape = 's32[1]{0}', space=sflag, size = 0x4, scoped, tag = 'scoped memory for tpu_custom_call.1']
    #allocation8 [shape = 'u8[512]{0}', space=smem, size = 0x200, scoped, tag = 'input window, operand 1, single buffered']
    #allocation9 [shape = 'u8[512]{0}', space=smem, size = 0x200, scoped, tag = 'input window, operand 2, single buffered']
    #allocation10 [shape = 's32[1]{0}', space=sflag, size = 0x4, scoped, tag = 'scoped memory for tpu_custom_call.1']
    #allocation11 [shape = 'u8[512]{0}', space=smem, size = 0x200, scoped, tag = 'input window, operand 3, single buffered']
    #allocation12 [shape = 'u8[512]{0}', space=smem, size = 0x200, scoped, tag = 'input window, operand 4, single buffered']
    #allocation13 [shape = 's32[1]{0}', space=sflag, size = 0x4, scoped, tag = 'scoped memory for tpu_custom_call.1']
    #allocation14 [shape = 'u8[512]{0}', space=smem, size = 0x200, scoped, tag = 'input window, operand 5, single buffered']
    #allocation15 [shape = 'u8[512]{0}', space=smem, size = 0x200, scoped, tag = 'input window, operand 6, single buffered']
    #allocation16 [shape = 's32[1]{0}', space=sflag, size = 0x4, scoped, tag = 'scoped memory for tpu_custom_call.1']
    #allocation17 [shape = 'u8[8192]{0}', space=vmem, size = 0x2000, scoped, tag = 'output window, operand 0, single buffered']
    %12 = vsyncpa [#allocation5], 0
    %13 = vsyncpa [#allocation7], 0
    %14 = vsyncpa [#allocation10], 0
    %15 = vsyncpa [#allocation13], 0
    %16 = vsyncpa [#allocation16], 0
    %17 = vsyncpa [#allocation6], 0
    // Predicated region
    $region2: #{tpu_custom_call.1} parent=1 // pred_check
      _
    $region3: #{tpu_custom_call.1} parent=1 // pred_check_branch
      %19 = sbr.rel (0) target = $region5
    $region4: #{tpu_custom_call.1} parent=1 // pred_region
      %s21 = ssub.s32 64, 64
      %22 = vsyncadd [#allocation5], %s21
      %s24 = sshll.u32 [#allocation4], 4
      %s25 = int_to_ptr.vmem [resolvable:$true] %s24
      %27 = dma.hbm_to_vmem [thread:$0]  %s0, 64, %s25, [#allocation5]
    $region5: #{tpu_custom_call.1} parent=1 // pred_fallthru
      _
    // Predicated region
    $region6: #{tpu_custom_call.1} parent=1 // pred_check
      _
    $region7: #{tpu_custom_call.1} parent=1 // pred_check_branch
      %29 = sbr.rel (0) target = $region9
    $region8: #{tpu_custom_call.1} parent=1 // pred_region
      %s31 = ssub.s32 16, 16
      %32 = vsyncadd [#allocation7], %s31
      %s34 = sshll.u32 %s1, 4
      %s35 = int_to_ptr.vmem [resolvable:$true] %s34
      %37 = dma.vmem_to_smem %s35, 16, [#allocation8], [#allocation7]
    $region9: #{tpu_custom_call.1} parent=1 // pred_fallthru
      _
    // Predicated region
    $region10: #{tpu_custom_call.1} parent=1 // pred_check
      _
    $region11: #{tpu_custom_call.1} parent=1 // pred_check_branch
      %39 = sbr.rel (0) target = $region13
    $region12: #{tpu_custom_call.1} parent=1 // pred_region
      %s41 = ssub.s32 16, 16
      %42 = vsyncadd [#allocation10], %s41
      %s44 = sshll.u32 %s2, 4
      %s45 = int_to_ptr.vmem [resolvable:$true] %s44
      %47 = dma.vmem_to_smem %s45, 16, [#allocation9], [#allocation10]
    $region13: #{tpu_custom_call.1} parent=1 // pred_fallthru
      _
    // Predicated region
    $region14: #{tpu_custom_call.1} parent=1 // pred_check
      _
    $region15: #{tpu_custom_call.1} parent=1 // pred_check_branch
      %49 = sbr.rel (0) target = $region17
    $region16: #{tpu_custom_call.1} parent=1 // pred_region
      %s51 = ssub.s32 16, 16
      %52 = vsyncadd [#allocation10], %s51
      %s54 = sshll.u32 %s3, 4
      %s55 = int_to_ptr.vmem [resolvable:$true] %s54
      %57 = dma.vmem_to_smem %s55, 16, [#allocation11], [#allocation10]
    $region17: #{tpu_custom_call.1} parent=1 // pred_fallthru
      _
    // Predicated region
    $region18: #{tpu_custom_call.1} parent=1 // pred_check
      _
    $region19: #{tpu_custom_call.1} parent=1 // pred_check_branch
      %59 = sbr.rel (0) target = $region21
    $region20: #{tpu_custom_call.1} parent=1 // pred_region
      %s61 = ssub.s32 16, 16
      %62 = vsyncadd [#allocation13], %s61
      %s64 = sshll.u32 %s4, 4
      %s65 = int_to_ptr.vmem [resolvable:$true] %s64
      %67 = dma.vmem_to_smem %s65, 16, [#allocation12], [#allocation13]
    $region21: #{tpu_custom_call.1} parent=1 // pred_fallthru
      _
    // Predicated region
    $region22: #{tpu_custom_call.1} parent=1 // pred_check
      _
    $region23: #{tpu_custom_call.1} parent=1 // pred_check_branch
      %69 = sbr.rel (0) target = $region25
    $region24: #{tpu_custom_call.1} parent=1 // pred_region
      %s71 = ssub.s32 16, 16
      %72 = vsyncadd [#allocation13], %s71
      %s74 = sshll.u32 %s5, 4
      %s75 = int_to_ptr.vmem [resolvable:$true] %s74
      %77 = dma.vmem_to_smem %s75, 16, [#allocation14], [#allocation13]
    $region25: #{tpu_custom_call.1} parent=1 // pred_fallthru
      _
    // Predicated region
    $region26: #{tpu_custom_call.1} parent=1 // pred_check
      _
    $region27: #{tpu_custom_call.1} parent=1 // pred_check_branch
      %79 = sbr.rel (0) target = $region29
    $region28: #{tpu_custom_call.1} parent=1 // pred_region
      %s81 = ssub.s32 16, 16
      %82 = vsyncadd [#allocation16], %s81
      %s84 = sshll.u32 %s6, 4
      %s85 = int_to_ptr.vmem [resolvable:$true] %s84
      %87 = dma.vmem_to_smem %s85, 16, [#allocation15], [#allocation16]
    $region29: #{tpu_custom_call.1} parent=1 // pred_fallthru
      _
    // Predicated region
    $region30: #{tpu_custom_call.1} parent=1 // pred_check
      _
    $region31: #{tpu_custom_call.1} parent=1 // pred_check_branch
      %89 = sbr.rel (0) target = $region33
    $region32: #{tpu_custom_call.1} parent=1 // pred_region
      %90 = dma.done [#allocation5], 64
    $region33: #{tpu_custom_call.1} parent=1 // pred_fallthru
      _
    // Predicated region
    $region34: #{tpu_custom_call.1} parent=1 // pred_check
      _
    $region35: #{tpu_custom_call.1} parent=1 // pred_check_branch
      %92 = sbr.rel (0) target = $region37
    $region36: #{tpu_custom_call.1} parent=1 // pred_region
      %93 = dma.done [#allocation7], 16
    $region37: #{tpu_custom_call.1} parent=1 // pred_fallthru
      _
    // Predicated region
    $region38: #{tpu_custom_call.1} parent=1 // pred_check
      _
    $region39: #{tpu_custom_call.1} parent=1 // pred_check_branch
      %95 = sbr.rel (0) target = $region41
    $region40: #{tpu_custom_call.1} parent=1 // pred_region
      %96 = dma.done [#allocation10], 16
    $region41: #{tpu_custom_call.1} parent=1 // pred_fallthru
      _
    // Predicated region
    $region42: #{tpu_custom_call.1} parent=1 // pred_check
      _
    $region43: #{tpu_custom_call.1} parent=1 // pred_check_branch
      %98 = sbr.rel (0) target = $region45
    $region44: #{tpu_custom_call.1} parent=1 // pred_region
      %99 = dma.done [#allocation10], 16
    $region45: #{tpu_custom_call.1} parent=1 // pred_fallthru
      _
    // Predicated region
    $region46: #{tpu_custom_call.1} parent=1 // pred_check
      _
    $region47: #{tpu_custom_call.1} parent=1 // pred_check_branch
      %101 = sbr.rel (0) target = $region49
    $region48: #{tpu_custom_call.1} parent=1 // pred_region
      %102 = dma.done [#allocation13], 16
    $region49: #{tpu_custom_call.1} parent=1 // pred_fallthru
      _
    // Predicated region
    $region50: #{tpu_custom_call.1} parent=1 // pred_check
      _
    $region51: #{tpu_custom_call.1} parent=1 // pred_check_branch
      %104 = sbr.rel (0) target = $region53
    $region52: #{tpu_custom_call.1} parent=1 // pred_region
      %105 = dma.done [#allocation13], 16
    $region53: #{tpu_custom_call.1} parent=1 // pred_fallthru
      _
    // Predicated region
    $region54: #{tpu_custom_call.1} parent=1 // pred_check
      _
    $region55: #{tpu_custom_call.1} parent=1 // pred_check_branch
      %107 = sbr.rel (0) target = $region57
    $region56: #{tpu_custom_call.1} parent=1 // pred_region
      %108 = dma.done [#allocation16], 16
    $region57: #{tpu_custom_call.1} parent=1 // pred_fallthru
      _
    %109 = sfence
    %v110 = vld [vmem:[#allocation4] sm:$0x3]
    %v111 = vld [vmem:[#allocation4] sm:$0xf]
    %v112 = vlaneseq
    %v113 = vand.u32 %v112, 127
    %vm114 = vcmp.lt.s32.totalorder %v113, 126
    %s115 = sld [smem:[#allocation8]]
    %v116 = vstv %s115
    %v117 = vmul.f32 %v116, %v110
    %s118 = sld [smem:[#allocation8 + $0x1]]
    %v119 = vstv %s118
    %v120 = vmul.f32 %v119, %v111
    %122 = vrot.lane.b32.xlu0 %v120, 127
    %v123 = vpop.permute.xlu0 %122
    %v124 = vrot.slane %v123, 2
    %vm125 = vcmask 1039360
    %v126 = vsel %vm125, %v123, %v124
    %v128 = vadd.f32 %v117, %v126
    %s129 = sld [smem:[#allocation8 + $0x2]]
    %v130 = vstv %s129
    %v131 = vmul.f32 %v130, %v111
    %133 = vrot.lane.b32.xlu0 %v131, 126
    %v134 = vpop.permute.xlu0 %133
    %v135 = vrot.slane %v134, 2
    %vm136 = vcmask 1031168
    %v137 = vsel %vm136, %v134, %v135
    %v139 = vadd.f32 %v128, %v137
    %v140 = vsel %vm114, %v139, 0.0
    %vm141 = vcmask 1041408
    %v142 = vsel %vm141, %v140, 0.0
    %143 = vadd.xlane.f32.xlu0 %v142
    %v144 = vpop.xlane.xlu0 %143
    %v145 = vrot.slane %v144, 4
    %v146 = vadd.f32 %v144, %v145
    %v147 = vrot.slane %v146, 2
    %v148 = vadd.f32 %v146, %v147
    %v149 = vrot.slane %v148, 1
    %v150 = vadd.f32 %v148, %v149
    %s151 = vtos %v150
    %v152 = vmul.f32 %v140, %v140
    %v153 = vsel %vm141, %v152, 0.0
    %154 = vadd.xlane.f32.xlu0 %v153
    %v155 = vpop.xlane.xlu0 %154
    %v156 = vrot.slane %v155, 4
    %v157 = vadd.f32 %v155, %v156
    %v158 = vrot.slane %v157, 2
    %v159 = vadd.f32 %v157, %v158
    %v160 = vrot.slane %v159, 1
    %v161 = vadd.f32 %v159, %v160
    %s162 = vtos %v161
    %s163 = smul.f32 %s151, 0.003968254
    %s164 = smul.f32 %s162, 0.003968254
    %s165 = smul.f32 %s163, %s163
    %s166 = ssub.f32 %s164, %s165
    %s167 = smax.f32 %s166, 0.0
    %s168 = sld [smem:[#allocation9]]
    %s169 = sadd.f32 %s167, 1e-05
    %v170 = vstv %s169
    %v171 = vrsqrt.pop %v170
    %s172 = vtos %v171
    %s173 = smul.f32 %s168, %s172
    %s174 = sld [smem:[#allocation11]]
    %s175 = smul.f32 %s163, %s173
    %s176 = ssub.f32 %s174, %s175
    %v177 = vstv %s173
    %v178 = vmul.f32 %v139, %v177
    %v179 = vstv %s176
    %v180 = vadd.f32 %v178, %v179
    %v181 = vmax.f32 %v180, 0.0
    %182 = vst [vmem:[#allocation3] sm:$0x3] %v181
    %v183 = vld [vmem:[#allocation3] sm:$0xf]
    %185 = vrot.lane.b32.xlu0 %v183, 127
    %v186 = vpop.permute.xlu0 %185
    %v187 = vrot.slane %v186, 2
    %v188 = vsel %vm125, %v186, %v187
    %v190 = vadd.f32 %v181, %v188
    %v191 = vmul.f32 %v190, 0.5
    %192 = vst [vmem:[#allocation2] sm:$0x3] %v191
    %s193 = sld [smem:[#allocation8 + $0x3]]
    %v194 = vstv %s193
    %v195 = vmul.f32 %v194, %v110
    %s196 = sld [smem:[#allocation8 + $0x4]]
    %v197 = vstv %s196
    %v198 = vmul.f32 %v197, %v111
    %200 = vrot.lane.b32.xlu0 %v198, 127
    %v201 = vpop.permute.xlu0 %200
    %v202 = vrot.slane %v201, 2
    %v203 = vsel %vm125, %v201, %v202
    %v205 = vadd.f32 %v195, %v203
    %s206 = sld [smem:[#allocation8 + $0x5]]
    %v207 = vstv %s206
    %v208 = vmul.f32 %v207, %v111
    %210 = vrot.lane.b32.xlu0 %v208, 126
    %v211 = vpop.permute.xlu0 %210
    %v212 = vrot.slane %v211, 2
    %v213 = vsel %vm136, %v211, %v212
    %v215 = vadd.f32 %v205, %v213
    %v216 = vsel %vm114, %v215, 0.0
    %v217 = vsel %vm141, %v216, 0.0
    %218 = vadd.xlane.f32.xlu0 %v217
    %v219 = vpop.xlane.xlu0 %218
    %v220 = vrot.slane %v219, 4
    %v221 = vadd.f32 %v219, %v220
    %v222 = vrot.slane %v221, 2
    %v223 = vadd.f32 %v221, %v222
    %v224 = vrot.slane %v223, 1
    %v225 = vadd.f32 %v223, %v224
    %s226 = vtos %v225
    %v227 = vmul.f32 %v216, %v216
    %v228 = vsel %vm141, %v227, 0.0
    %229 = vadd.xlane.f32.xlu0 %v228
    %v230 = vpop.xlane.xlu0 %229
    %v231 = vrot.slane %v230, 4
    %v232 = vadd.f32 %v230, %v231
    %v233 = vrot.slane %v232, 2
    %v234 = vadd.f32 %v232, %v233
    %v235 = vrot.slane %v234, 1
    %v236 = vadd.f32 %v234, %v235
    %s237 = vtos %v236
    %s238 = smul.f32 %s226, 0.003968254
    %s239 = smul.f32 %s237, 0.003968254
    %s240 = smul.f32 %s238, %s238
    %s241 = ssub.f32 %s239, %s240
    %s242 = smax.f32 %s241, 0.0
    %s243 = sld [smem:[#allocation9 + $0x1]]
    %s244 = sadd.f32 %s242, 1e-05
    %v245 = vstv %s244
    %v246 = vrsqrt.pop %v245
    %s247 = vtos %v246
    %s248 = smul.f32 %s243, %s247
    %s249 = sld [smem:[#allocation11 + $0x1]]
    %s250 = smul.f32 %s238, %s248
    %s251 = ssub.f32 %s249, %s250
    %v252 = vstv %s248
    %v253 = vmul.f32 %v215, %v252
    %v254 = vstv %s251
    %v255 = vadd.f32 %v253, %v254
    %v256 = vmax.f32 %v255, 0.0
    %257 = vst [vmem:[#allocation3] sm:$0x3] %v256
    %v258 = vld [vmem:[#allocation3] sm:$0xf]
    %260 = vrot.lane.b32.xlu0 %v258, 127
    %v261 = vpop.permute.xlu0 %260
    %v262 = vrot.slane %v261, 2
    %v263 = vsel %vm125, %v261, %v262
    %v265 = vadd.f32 %v256, %v263
    %v266 = vmul.f32 %v265, 0.5
    %s267 = scalar_lea.vmem [#allocation2], 4
    %268 = vst [vmem:[%s267] sm:$0x3] %v266
    %s269 = sld [smem:[#allocation8 + $0x6]]
    %v270 = vstv %s269
    %v271 = vmul.f32 %v270, %v110
    %s272 = sld [smem:[#allocation8 + $0x7]]
    %v273 = vstv %s272
    %v274 = vmul.f32 %v273, %v111
    %276 = vrot.lane.b32.xlu0 %v274, 127
    %v277 = vpop.permute.xlu0 %276
    %v278 = vrot.slane %v277, 2
    %v279 = vsel %vm125, %v277, %v278
    %v281 = vadd.f32 %v271, %v279
    %s282 = sld [smem:[#allocation8 + $0x8]]
    %v283 = vstv %s282
    %v284 = vmul.f32 %v283, %v111
    %286 = vrot.lane.b32.xlu0 %v284, 126
    %v287 = vpop.permute.xlu0 %286
    %v288 = vrot.slane %v287, 2
    %v289 = vsel %vm136, %v287, %v288
    %v291 = vadd.f32 %v281, %v289
    %v292 = vsel %vm114, %v291, 0.0
    %v293 = vsel %vm141, %v292, 0.0
    %294 = vadd.xlane.f32.xlu0 %v293
    %v295 = vpop.xlane.xlu0 %294
    %v296 = vrot.slane %v295, 4
    %v297 = vadd.f32 %v295, %v296
    %v298 = vrot.slane %v297, 2
    %v299 = vadd.f32 %v297, %v298
    %v300 = vrot.slane %v299, 1
    %v301 = vadd.f32 %v299, %v300
    %s302 = vtos %v301
    %v303 = vmul.f32 %v292, %v292
    %v304 = vsel %vm141, %v303, 0.0
    %305 = vadd.xlane.f32.xlu0 %v304
    %v306 = vpop.xlane.xlu0 %305
    %v307 = vrot.slane %v306, 4
    %v308 = vadd.f32 %v306, %v307
    %v309 = vrot.slane %v308, 2
    %v310 = vadd.f32 %v308, %v309
    %v311 = vrot.slane %v310, 1
    %v312 = vadd.f32 %v310, %v311
    %s313 = vtos %v312
    %s314 = smul.f32 %s302, 0.003968254
    %s315 = smul.f32 %s313, 0.003968254
    %s316 = smul.f32 %s314, %s314
    %s317 = ssub.f32 %s315, %s316
    %s318 = smax.f32 %s317, 0.0
    %s319 = sld [smem:[#allocation9 + $0x2]]
    %s320 = sadd.f32 %s318, 1e-05
    %v321 = vstv %s320
    %v322 = vrsqrt.pop %v321
    %s323 = vtos %v322
    %s324 = smul.f32 %s319, %s323
    %s325 = sld [smem:[#allocation11 + $0x2]]
    %s326 = smul.f32 %s314, %s324
    %s327 = ssub.f32 %s325, %s326
    %v328 = vstv %s324
    %v329 = vmul.f32 %v291, %v328
    %v330 = vstv %s327
    %v331 = vadd.f32 %v329, %v330
    %v332 = vmax.f32 %v331, 0.0
    %333 = vst [vmem:[#allocation3] sm:$0x3] %v332
    %v334 = vld [vmem:[#allocation3] sm:$0xf]
    %336 = vrot.lane.b32.xlu0 %v334, 127
    %v337 = vpop.permute.xlu0 %336
    %v338 = vrot.slane %v337, 2
    %v339 = vsel %vm125, %v337, %v338
    %v341 = vadd.f32 %v332, %v339
    %v342 = vmul.f32 %v341, 0.5
    %s343 = scalar_lea.vmem [#allocation2], 8
    %344 = vst [vmem:[%s343] sm:$0x3] %v342
    %s345 = sld [smem:[#allocation8 + $0x9]]
    %v346 = vstv %s345
    %v347 = vmul.f32 %v346, %v110
    %s348 = sld [smem:[#allocation8 + $0xa]]
    %v349 = vstv %s348
    %v350 = vmul.f32 %v349, %v111
    %352 = vrot.lane.b32.xlu0 %v350, 127
    %v353 = vpop.permute.xlu0 %352
    %v354 = vrot.slane %v353, 2
    %v355 = vsel %vm125, %v353, %v354
    %v357 = vadd.f32 %v347, %v355
    %s358 = sld [smem:[#allocation8 + $0xb]]
    %v359 = vstv %s358
    %v360 = vmul.f32 %v359, %v111
    %362 = vrot.lane.b32.xlu0 %v360, 126
    %v363 = vpop.permute.xlu0 %362
    %v364 = vrot.slane %v363, 2
    %v365 = vsel %vm136, %v363, %v364
    %v367 = vadd.f32 %v357, %v365
    %v368 = vsel %vm114, %v367, 0.0
    %v369 = vsel %vm141, %v368, 0.0
    %370 = vadd.xlane.f32.xlu0 %v369
    %v371 = vpop.xlane.xlu0 %370
    %v372 = vrot.slane %v371, 4
    %v373 = vadd.f32 %v371, %v372
    %v374 = vrot.slane %v373, 2
    %v375 = vadd.f32 %v373, %v374
    %v376 = vrot.slane %v375, 1
    %v377 = vadd.f32 %v375, %v376
    %s378 = vtos %v377
    %v379 = vmul.f32 %v368, %v368
    %v380 = vsel %vm141, %v379, 0.0
    %381 = vadd.xlane.f32.xlu0 %v380
    %v382 = vpop.xlane.xlu0 %381
    %v383 = vrot.slane %v382, 4
    %v384 = vadd.f32 %v382, %v383
    %v385 = vrot.slane %v384, 2
    %v386 = vadd.f32 %v384, %v385
    %v387 = vrot.slane %v386, 1
    %v388 = vadd.f32 %v386, %v387
    %s389 = vtos %v388
    %s390 = smul.f32 %s378, 0.003968254
    %s391 = smul.f32 %s389, 0.003968254
    %s392 = smul.f32 %s390, %s390
    %s393 = ssub.f32 %s391, %s392
    %s394 = smax.f32 %s393, 0.0
    %s395 = sld [smem:[#allocation9 + $0x3]]
    %s396 = sadd.f32 %s394, 1e-05
    %v397 = vstv %s396
    %v398 = vrsqrt.pop %v397
    %s399 = vtos %v398
    %s400 = smul.f32 %s395, %s399
    %s401 = sld [smem:[#allocation11 + $0x3]]
    %s402 = smul.f32 %s390, %s400
    %s403 = ssub.f32 %s401, %s402
    %v404 = vstv %s400
    %v405 = vmul.f32 %v367, %v404
    %v406 = vstv %s403
    %v407 = vadd.f32 %v405, %v406
    %v408 = vmax.f32 %v407, 0.0
    %409 = vst [vmem:[#allocation3] sm:$0x3] %v408
    %v410 = vld [vmem:[#allocation3] sm:$0xf]
    %412 = vrot.lane.b32.xlu0 %v410, 127
    %v413 = vpop.permute.xlu0 %412
    %v414 = vrot.slane %v413, 2
    %v415 = vsel %vm125, %v413, %v414
    %v417 = vadd.f32 %v408, %v415
    %v418 = vmul.f32 %v417, 0.5
    %s419 = scalar_lea.vmem [#allocation2], 12
    %420 = vst [vmem:[%s419] sm:$0x3] %v418
    %v421 = vld [vmem:[#allocation2] sm:$0x3]
    %v422 = vld [vmem:[#allocation2] sm:$0xf]
    %v423 = vld [vmem:[%s267] sm:$0x3]
    %v424 = vld [vmem:[%s267] sm:$0xf]
    %v425 = vld [vmem:[%s343] sm:$0x3]
    %v426 = vld [vmem:[%s343] sm:$0xf]
    %v427 = vld [vmem:[%s419] sm:$0x3]
    %v428 = vld [vmem:[%s419] sm:$0xf]
    %vm429 = vcmp.lt.s32.totalorder %v113, 122
    %v430 = vand.u32 %v113, 1
    %vm431 = vcmp.eq.s32.totalorder %v430, 0
    %vm432 = vmand %vm429, %vm431
    %s433 = sld [smem:[#allocation12]]
    %v434 = vstv %s433
    %v435 = vmul.f32 %v434, %v421
    %s436 = sld [smem:[#allocation12 + $0x1]]
    %v437 = vstv %s436
    %v438 = vmul.f32 %v437, %v422
    %440 = vrot.lane.b32.xlu0 %v438, 126
    %v441 = vpop.permute.xlu0 %440
    %v442 = vrot.slane %v441, 2
    %v443 = vsel %vm136, %v441, %v442
    %v445 = vadd.f32 %v435, %v443
    %s446 = sld [smem:[#allocation12 + $0x2]]
    %v447 = vstv %s446
    %v448 = vmul.f32 %v447, %v422
    %450 = vrot.lane.b32.xlu0 %v448, 124
    %v451 = vpop.permute.xlu0 %450
    %v452 = vrot.slane %v451, 2
    %vm453 = vcmask 1014784
    %v454 = vsel %vm453, %v451, %v452
    %v456 = vadd.f32 %v445, %v454
    %s457 = sld [smem:[#allocation12 + $0x3]]
    %v458 = vstv %s457
    %v459 = vmul.f32 %v458, %v423
    %v460 = vadd.f32 %v456, %v459
    %s461 = sld [smem:[#allocation12 + $0x4]]
    %v462 = vstv %s461
    %v463 = vmul.f32 %v462, %v424
    %465 = vrot.lane.b32.xlu0 %v463, 126
    %v466 = vpop.permute.xlu0 %465
    %v467 = vrot.slane %v466, 2
    %v468 = vsel %vm136, %v466, %v467
    %v470 = vadd.f32 %v460, %v468
    %s471 = sld [smem:[#allocation12 + $0x5]]
    %v472 = vstv %s471
    %v473 = vmul.f32 %v472, %v424
    %475 = vrot.lane.b32.xlu0 %v473, 124
    %v476 = vpop.permute.xlu0 %475
    %v477 = vrot.slane %v476, 2
    %v478 = vsel %vm453, %v476, %v477
    %v480 = vadd.f32 %v470, %v478
    %s481 = sld [smem:[#allocation12 + $0x6]]
    %v482 = vstv %s481
    %v483 = vmul.f32 %v482, %v425
    %v484 = vadd.f32 %v480, %v483
    %s485 = sld [smem:[#allocation12 + $0x7]]
    %v486 = vstv %s485
    %v487 = vmul.f32 %v486, %v426
    %489 = vrot.lane.b32.xlu0 %v487, 126
    %v490 = vpop.permute.xlu0 %489
    %v491 = vrot.slane %v490, 2
    %v492 = vsel %vm136, %v490, %v491
    %v494 = vadd.f32 %v484, %v492
    %s495 = sld [smem:[#allocation12 + $0x8]]
    %v496 = vstv %s495
    %v497 = vmul.f32 %v496, %v426
    %499 = vrot.lane.b32.xlu0 %v497, 124
    %v500 = vpop.permute.xlu0 %499
    %v501 = vrot.slane %v500, 2
    %v502 = vsel %vm453, %v500, %v501
    %v504 = vadd.f32 %v494, %v502
    %s505 = sld [smem:[#allocation12 + $0x9]]
    %v506 = vstv %s505
    %v507 = vmul.f32 %v506, %v427
    %v508 = vadd.f32 %v504, %v507
    %s509 = sld [smem:[#allocation12 + $0xa]]
    %v510 = vstv %s509
    %v511 = vmul.f32 %v510, %v428
    %513 = vrot.lane.b32.xlu0 %v511, 126
    %v514 = vpop.permute.xlu0 %513
    %v515 = vrot.slane %v514, 2
    %v516 = vsel %vm136, %v514, %v515
    %v518 = vadd.f32 %v508, %v516
    %s519 = sld [smem:[#allocation12 + $0xb]]
    %v520 = vstv %s519
    %v521 = vmul.f32 %v520, %v428
    %523 = vrot.lane.b32.xlu0 %v521, 124
    %v524 = vpop.permute.xlu0 %523
    %v525 = vrot.slane %v524, 2
    %v526 = vsel %vm453, %v524, %v525
    %v528 = vadd.f32 %v518, %v526
    %v529 = vsel %vm432, %v528, 0.0
    %v530 = vsel %vm141, %v529, 0.0
    %531 = vadd.xlane.f32.xlu0 %v530
    %v532 = vpop.xlane.xlu0 %531
    %v533 = vrot.slane %v532, 4
    %v534 = vadd.f32 %v532, %v533
    %v535 = vrot.slane %v534, 2
    %v536 = vadd.f32 %v534, %v535
    %v537 = vrot.slane %v536, 1
    %v538 = vadd.f32 %v536, %v537
    %s539 = vtos %v538
    %v540 = vmul.f32 %v529, %v529
    %v541 = vsel %vm141, %v540, 0.0
    %542 = vadd.xlane.f32.xlu0 %v541
    %v543 = vpop.xlane.xlu0 %542
    %v544 = vrot.slane %v543, 4
    %v545 = vadd.f32 %v543, %v544
    %v546 = vrot.slane %v545, 2
    %v547 = vadd.f32 %v545, %v546
    %v548 = vrot.slane %v547, 1
    %v549 = vadd.f32 %v547, %v548
    %s550 = vtos %v549
    %s551 = smul.f32 %s539, 0.008196721
    %s552 = smul.f32 %s550, 0.008196721
    %s553 = smul.f32 %s551, %s551
    %s554 = ssub.f32 %s552, %s553
    %s555 = smax.f32 %s554, 0.0
    %s556 = sld [smem:[#allocation14]]
    %s557 = sadd.f32 %s555, 1e-05
    %v558 = vstv %s557
    %v559 = vrsqrt.pop %v558
    %s560 = vtos %v559
    %s561 = smul.f32 %s556, %s560
    %s562 = sld [smem:[#allocation15]]
    %s563 = smul.f32 %s551, %s561
    %s564 = ssub.f32 %s562, %s563
    %v565 = vstv %s561
    %v566 = vmul.f32 %v528, %v565
    %v567 = vstv %s564
    %v568 = vadd.f32 %v566, %v567
    %v569 = vmax.f32 %v568, 0.0
    %570 = vst [vmem:[#allocation3] sm:$0x3] %v569
    %v571 = vld [vmem:[#allocation3] sm:$0xf]
    %573 = vrot.lane.b32.xlu0 %v571, 126
    %v574 = vpop.permute.xlu0 %573
    %v575 = vrot.slane %v574, 2
    %v576 = vsel %vm136, %v574, %v575
    %v578 = vadd.f32 %v569, %v576
    %v579 = vmul.f32 %v578, 0.5
    %580 = vst [vmem:[#allocation17] sm:$0x3] %v579
    %s581 = sld [smem:[#allocation12 + $0xc]]
    %v582 = vstv %s581
    %v583 = vmul.f32 %v582, %v421
    %s584 = sld [smem:[#allocation12 + $0xd]]
    %v585 = vstv %s584
    %v586 = vmul.f32 %v585, %v422
    %588 = vrot.lane.b32.xlu0 %v586, 126
    %v589 = vpop.permute.xlu0 %588
    %v590 = vrot.slane %v589, 2
    %v591 = vsel %vm136, %v589, %v590
    %v593 = vadd.f32 %v583, %v591
    %s594 = sld [smem:[#allocation12 + $0xe]]
    %v595 = vstv %s594
    %v596 = vmul.f32 %v595, %v422
    %598 = vrot.lane.b32.xlu0 %v596, 124
    %v599 = vpop.permute.xlu0 %598
    %v600 = vrot.slane %v599, 2
    %v601 = vsel %vm453, %v599, %v600
    %v603 = vadd.f32 %v593, %v601
    %s604 = sld [smem:[#allocation12 + $0xf]]
    %v605 = vstv %s604
    %v606 = vmul.f32 %v605, %v423
    %v607 = vadd.f32 %v603, %v606
    %s608 = sld [smem:[#allocation12 + $0x10]]
    %v609 = vstv %s608
    %v610 = vmul.f32 %v609, %v424
    %612 = vrot.lane.b32.xlu0 %v610, 126
    %v613 = vpop.permute.xlu0 %612
    %v614 = vrot.slane %v613, 2
    %v615 = vsel %vm136, %v613, %v614
    %v617 = vadd.f32 %v607, %v615
    %s618 = sld [smem:[#allocation12 + $0x11]]
    %v619 = vstv %s618
    %v620 = vmul.f32 %v619, %v424
    %622 = vrot.lane.b32.xlu0 %v620, 124
    %v623 = vpop.permute.xlu0 %622
    %v624 = vrot.slane %v623, 2
    %v625 = vsel %vm453, %v623, %v624
    %v627 = vadd.f32 %v617, %v625
    %s628 = sld [smem:[#allocation12 + $0x12]]
    %v629 = vstv %s628
    %v630 = vmul.f32 %v629, %v425
    %v631 = vadd.f32 %v627, %v630
    %s632 = sld [smem:[#allocation12 + $0x13]]
    %v633 = vstv %s632
    %v634 = vmul.f32 %v633, %v426
    %636 = vrot.lane.b32.xlu0 %v634, 126
    %v637 = vpop.permute.xlu0 %636
    %v638 = vrot.slane %v637, 2
    %v639 = vsel %vm136, %v637, %v638
    %v641 = vadd.f32 %v631, %v639
    %s642 = sld [smem:[#allocation12 + $0x14]]
    %v643 = vstv %s642
    %v644 = vmul.f32 %v643, %v426
    %646 = vrot.lane.b32.xlu0 %v644, 124
    %v647 = vpop.permute.xlu0 %646
    %v648 = vrot.slane %v647, 2
    %v649 = vsel %vm453, %v647, %v648
    %v651 = vadd.f32 %v641, %v649
    %s652 = sld [smem:[#allocation12 + $0x15]]
    %v653 = vstv %s652
    %v654 = vmul.f32 %v653, %v427
    %v655 = vadd.f32 %v651, %v654
    %s656 = sld [smem:[#allocation12 + $0x16]]
    %v657 = vstv %s656
    %v658 = vmul.f32 %v657, %v428
    %660 = vrot.lane.b32.xlu0 %v658, 126
    %v661 = vpop.permute.xlu0 %660
    %v662 = vrot.slane %v661, 2
    %v663 = vsel %vm136, %v661, %v662
    %v665 = vadd.f32 %v655, %v663
    %s666 = sld [smem:[#allocation12 + $0x17]]
    %v667 = vstv %s666
    %v668 = vmul.f32 %v667, %v428
    %670 = vrot.lane.b32.xlu0 %v668, 124
    %v671 = vpop.permute.xlu0 %670
    %v672 = vrot.slane %v671, 2
    %v673 = vsel %vm453, %v671, %v672
    %v675 = vadd.f32 %v665, %v673
    %v676 = vsel %vm432, %v675, 0.0
    %v677 = vsel %vm141, %v676, 0.0
    %678 = vadd.xlane.f32.xlu0 %v677
    %v679 = vpop.xlane.xlu0 %678
    %v680 = vrot.slane %v679, 4
    %v681 = vadd.f32 %v679, %v680
    %v682 = vrot.slane %v681, 2
    %v683 = vadd.f32 %v681, %v682
    %v684 = vrot.slane %v683, 1
    %v685 = vadd.f32 %v683, %v684
    %s686 = vtos %v685
    %v687 = vmul.f32 %v676, %v676
    %v688 = vsel %vm141, %v687, 0.0
    %689 = vadd.xlane.f32.xlu0 %v688
    %v690 = vpop.xlane.xlu0 %689
    %v691 = vrot.slane %v690, 4
    %v692 = vadd.f32 %v690, %v691
    %v693 = vrot.slane %v692, 2
    %v694 = vadd.f32 %v692, %v693
    %v695 = vrot.slane %v694, 1
    %v696 = vadd.f32 %v694, %v695
    %s697 = vtos %v696
    %s698 = smul.f32 %s686, 0.008196721
    %s699 = smul.f32 %s697, 0.008196721
    %s700 = smul.f32 %s698, %s698
    %s701 = ssub.f32 %s699, %s700
    %s702 = smax.f32 %s701, 0.0
    %s703 = sld [smem:[#allocation14 + $0x1]]
    %s704 = sadd.f32 %s702, 1e-05
    %v705 = vstv %s704
    %v706 = vrsqrt.pop %v705
    %s707 = vtos %v706
    %s708 = smul.f32 %s703, %s707
    %s709 = sld [smem:[#allocation15 + $0x1]]
    %s710 = smul.f32 %s698, %s708
    %s711 = ssub.f32 %s709, %s710
    %v712 = vstv %s708
    %v713 = vmul.f32 %v675, %v712
    %v714 = vstv %s711
    %v715 = vadd.f32 %v713, %v714
    %v716 = vmax.f32 %v715, 0.0
    %717 = vst [vmem:[#allocation3] sm:$0x3] %v716
    %v718 = vld [vmem:[#allocation3] sm:$0xf]
    %720 = vrot.lane.b32.xlu0 %v718, 126
    %v721 = vpop.permute.xlu0 %720
    %v722 = vrot.slane %v721, 2
    %v723 = vsel %vm136, %v721, %v722
    %v725 = vadd.f32 %v716, %v723
    %v726 = vmul.f32 %v725, 0.5
    %s727 = scalar_lea.vmem [#allocation17], 2
    %728 = vst [vmem:[%s727] sm:$0x3] %v726
    %s729 = sld [smem:[#allocation12 + $0x18]]
    %v730 = vstv %s729
    %v731 = vmul.f32 %v730, %v421
    %s732 = sld [smem:[#allocation12 + $0x19]]
    %v733 = vstv %s732
    %v734 = vmul.f32 %v733, %v422
    %736 = vrot.lane.b32.xlu0 %v734, 126
    %v737 = vpop.permute.xlu0 %736
    %v738 = vrot.slane %v737, 2
    %v739 = vsel %vm136, %v737, %v738
    %v741 = vadd.f32 %v731, %v739
    %s742 = sld [smem:[#allocation12 + $0x1a]]
    %v743 = vstv %s742
    %v744 = vmul.f32 %v743, %v422
    %746 = vrot.lane.b32.xlu0 %v744, 124
    %v747 = vpop.permute.xlu0 %746
    %v748 = vrot.slane %v747, 2
    %v749 = vsel %vm453, %v747, %v748
    %v751 = vadd.f32 %v741, %v749
    %s752 = sld [smem:[#allocation12 + $0x1b]]
    %v753 = vstv %s752
    %v754 = vmul.f32 %v753, %v423
    %v755 = vadd.f32 %v751, %v754
    %s756 = sld [smem:[#allocation12 + $0x1c]]
    %v757 = vstv %s756
    %v758 = vmul.f32 %v757, %v424
    %760 = vrot.lane.b32.xlu0 %v758, 126
    %v761 = vpop.permute.xlu0 %760
    %v762 = vrot.slane %v761, 2
    %v763 = vsel %vm136, %v761, %v762
    %v765 = vadd.f32 %v755, %v763
    %s766 = sld [smem:[#allocation12 + $0x1d]]
    %v767 = vstv %s766
    %v768 = vmul.f32 %v767, %v424
    %770 = vrot.lane.b32.xlu0 %v768, 124
    %v771 = vpop.permute.xlu0 %770
    %v772 = vrot.slane %v771, 2
    %v773 = vsel %vm453, %v771, %v772
    %v775 = vadd.f32 %v765, %v773
    %s776 = sld [smem:[#allocation12 + $0x1e]]
    %v777 = vstv %s776
    %v778 = vmul.f32 %v777, %v425
    %v779 = vadd.f32 %v775, %v778
    %s780 = sld [smem:[#allocation12 + $0x1f]]
    %v781 = vstv %s780
    %v782 = vmul.f32 %v781, %v426
    %784 = vrot.lane.b32.xlu0 %v782, 126
    %v785 = vpop.permute.xlu0 %784
    %v786 = vrot.slane %v785, 2
    %v787 = vsel %vm136, %v785, %v786
    %v789 = vadd.f32 %v779, %v787
    %s790 = sld [smem:[#allocation12 + $0x20]]
    %v791 = vstv %s790
    %v792 = vmul.f32 %v791, %v426
    %794 = vrot.lane.b32.xlu0 %v792, 124
    %v795 = vpop.permute.xlu0 %794
    %v796 = vrot.slane %v795, 2
    %v797 = vsel %vm453, %v795, %v796
    %v799 = vadd.f32 %v789, %v797
    %s800 = sld [smem:[#allocation12 + $0x21]]
    %v801 = vstv %s800
    %v802 = vmul.f32 %v801, %v427
    %v803 = vadd.f32 %v799, %v802
    %s804 = sld [smem:[#allocation12 + $0x22]]
    %v805 = vstv %s804
    %v806 = vmul.f32 %v805, %v428
    %808 = vrot.lane.b32.xlu0 %v806, 126
    %v809 = vpop.permute.xlu0 %808
    %v810 = vrot.slane %v809, 2
    %v811 = vsel %vm136, %v809, %v810
    %v813 = vadd.f32 %v803, %v811
    %s814 = sld [smem:[#allocation12 + $0x23]]
    %v815 = vstv %s814
    %v816 = vmul.f32 %v815, %v428
    %818 = vrot.lane.b32.xlu0 %v816, 124
    %v819 = vpop.permute.xlu0 %818
    %v820 = vrot.slane %v819, 2
    %v821 = vsel %vm453, %v819, %v820
    %v823 = vadd.f32 %v813, %v821
    %v824 = vsel %vm432, %v823, 0.0
    %v825 = vsel %vm141, %v824, 0.0
    %826 = vadd.xlane.f32.xlu0 %v825
    %v827 = vpop.xlane.xlu0 %826
    %v828 = vrot.slane %v827, 4
    %v829 = vadd.f32 %v827, %v828
    %v830 = vrot.slane %v829, 2
    %v831 = vadd.f32 %v829, %v830
    %v832 = vrot.slane %v831, 1
    %v833 = vadd.f32 %v831, %v832
    %s834 = vtos %v833
    %v835 = vmul.f32 %v824, %v824
    %v836 = vsel %vm141, %v835, 0.0
    %837 = vadd.xlane.f32.xlu0 %v836
    %v838 = vpop.xlane.xlu0 %837
    %v839 = vrot.slane %v838, 4
    %v840 = vadd.f32 %v838, %v839
    %v841 = vrot.slane %v840, 2
    %v842 = vadd.f32 %v840, %v841
    %v843 = vrot.slane %v842, 1
    %v844 = vadd.f32 %v842, %v843
    %s845 = vtos %v844
    %s846 = smul.f32 %s834, 0.008196721
    %s847 = smul.f32 %s845, 0.008196721
    %s848 = smul.f32 %s846, %s846
    %s849 = ssub.f32 %s847, %s848
    %s850 = smax.f32 %s849, 0.0
    %s851 = sld [smem:[#allocation14 + $0x2]]
    %s852 = sadd.f32 %s850, 1e-05
    %v853 = vstv %s852
    %v854 = vrsqrt.pop %v853
    %s855 = vtos %v854
    %s856 = smul.f32 %s851, %s855
    %s857 = sld [smem:[#allocation15 + $0x2]]
    %s858 = smul.f32 %s846, %s856
    %s859 = ssub.f32 %s857, %s858
    %v860 = vstv %s856
    %v861 = vmul.f32 %v823, %v860
    %v862 = vstv %s859
    %v863 = vadd.f32 %v861, %v862
    %v864 = vmax.f32 %v863, 0.0
    %865 = vst [vmem:[#allocation3] sm:$0x3] %v864
    %v866 = vld [vmem:[#allocation3] sm:$0xf]
    %868 = vrot.lane.b32.xlu0 %v866, 126
    %v869 = vpop.permute.xlu0 %868
    %v870 = vrot.slane %v869, 2
    %v871 = vsel %vm136, %v869, %v870
    %v873 = vadd.f32 %v864, %v871
    %v874 = vmul.f32 %v873, 0.5
    %s875 = scalar_lea.vmem [#allocation17], 4
    %876 = vst [vmem:[%s875] sm:$0x3] %v874
    %s877 = sld [smem:[#allocation12 + $0x24]]
    %v878 = vstv %s877
    %v879 = vmul.f32 %v878, %v421
    %s880 = sld [smem:[#allocation12 + $0x25]]
    %v881 = vstv %s880
    %v882 = vmul.f32 %v881, %v422
    %884 = vrot.lane.b32.xlu0 %v882, 126
    %v885 = vpop.permute.xlu0 %884
    %v886 = vrot.slane %v885, 2
    %v887 = vsel %vm136, %v885, %v886
    %v889 = vadd.f32 %v879, %v887
    %s890 = sld [smem:[#allocation12 + $0x26]]
    %v891 = vstv %s890
    %v892 = vmul.f32 %v891, %v422
    %894 = vrot.lane.b32.xlu0 %v892, 124
    %v895 = vpop.permute.xlu0 %894
    %v896 = vrot.slane %v895, 2
    %v897 = vsel %vm453, %v895, %v896
    %v899 = vadd.f32 %v889, %v897
    %s900 = sld [smem:[#allocation12 + $0x27]]
    %v901 = vstv %s900
    %v902 = vmul.f32 %v901, %v423
    %v903 = vadd.f32 %v899, %v902
    %s904 = sld [smem:[#allocation12 + $0x28]]
    %v905 = vstv %s904
    %v906 = vmul.f32 %v905, %v424
    %908 = vrot.lane.b32.xlu0 %v906, 126
    %v909 = vpop.permute.xlu0 %908
    %v910 = vrot.slane %v909, 2
    %v911 = vsel %vm136, %v909, %v910
    %v913 = vadd.f32 %v903, %v911
    %s914 = sld [smem:[#allocation12 + $0x29]]
    %v915 = vstv %s914
    %v916 = vmul.f32 %v915, %v424
    %918 = vrot.lane.b32.xlu0 %v916, 124
    %v919 = vpop.permute.xlu0 %918
    %v920 = vrot.slane %v919, 2
    %v921 = vsel %vm453, %v919, %v920
    %v923 = vadd.f32 %v913, %v921
    %s924 = sld [smem:[#allocation12 + $0x2a]]
    %v925 = vstv %s924
    %v926 = vmul.f32 %v925, %v425
    %v927 = vadd.f32 %v923, %v926
    %s928 = sld [smem:[#allocation12 + $0x2b]]
    %v929 = vstv %s928
    %v930 = vmul.f32 %v929, %v426
    %932 = vrot.lane.b32.xlu0 %v930, 126
    %v933 = vpop.permute.xlu0 %932
    %v934 = vrot.slane %v933, 2
    %v935 = vsel %vm136, %v933, %v934
    %v937 = vadd.f32 %v927, %v935
    %s938 = sld [smem:[#allocation12 + $0x2c]]
    %v939 = vstv %s938
    %v940 = vmul.f32 %v939, %v426
    %942 = vrot.lane.b32.xlu0 %v940, 124
    %v943 = vpop.permute.xlu0 %942
    %v944 = vrot.slane %v943, 2
    %v945 = vsel %vm453, %v943, %v944
    %v947 = vadd.f32 %v937, %v945
    %s948 = sld [smem:[#allocation12 + $0x2d]]
    %v949 = vstv %s948
    %v950 = vmul.f32 %v949, %v427
    %v951 = vadd.f32 %v947, %v950
    %s952 = sld [smem:[#allocation12 + $0x2e]]
    %v953 = vstv %s952
    %v954 = vmul.f32 %v953, %v428
    %956 = vrot.lane.b32.xlu0 %v954, 126
    %v957 = vpop.permute.xlu0 %956
    %v958 = vrot.slane %v957, 2
    %v959 = vsel %vm136, %v957, %v958
    %v961 = vadd.f32 %v951, %v959
    %s962 = sld [smem:[#allocation12 + $0x2f]]
    %v963 = vstv %s962
    %v964 = vmul.f32 %v963, %v428
    %966 = vrot.lane.b32.xlu0 %v964, 124
    %v967 = vpop.permute.xlu0 %966
    %v968 = vrot.slane %v967, 2
    %v969 = vsel %vm453, %v967, %v968
    %v971 = vadd.f32 %v961, %v969
    %v972 = vsel %vm432, %v971, 0.0
    %v973 = vsel %vm141, %v972, 0.0
    %974 = vadd.xlane.f32.xlu0 %v973
    %v975 = vpop.xlane.xlu0 %974
    %v976 = vrot.slane %v975, 4
    %v977 = vadd.f32 %v975, %v976
    %v978 = vrot.slane %v977, 2
    %v979 = vadd.f32 %v977, %v978
    %v980 = vrot.slane %v979, 1
    %v981 = vadd.f32 %v979, %v980
    %s982 = vtos %v981
    %v983 = vmul.f32 %v972, %v972
    %v984 = vsel %vm141, %v983, 0.0
    %985 = vadd.xlane.f32.xlu0 %v984
    %v986 = vpop.xlane.xlu0 %985
    %v987 = vrot.slane %v986, 4
    %v988 = vadd.f32 %v986, %v987
    %v989 = vrot.slane %v988, 2
    %v990 = vadd.f32 %v988, %v989
    %v991 = vrot.slane %v990, 1
    %v992 = vadd.f32 %v990, %v991
    %s993 = vtos %v992
    %s994 = smul.f32 %s982, 0.008196721
    %s995 = smul.f32 %s993, 0.008196721
    %s996 = smul.f32 %s994, %s994
    %s997 = ssub.f32 %s995, %s996
    %s998 = smax.f32 %s997, 0.0
    %s999 = sld [smem:[#allocation14 + $0x3]]
    %s1000 = sadd.f32 %s998, 1e-05
    %v1001 = vstv %s1000
    %v1002 = vrsqrt.pop %v1001
    %s1003 = vtos %v1002
    %s1004 = smul.f32 %s999, %s1003
    %s1005 = sld [smem:[#allocation15 + $0x3]]
    %s1006 = smul.f32 %s994, %s1004
    %s1007 = ssub.f32 %s1005, %s1006
    %v1008 = vstv %s1004
    %v1009 = vmul.f32 %v971, %v1008
    %v1010 = vstv %s1007
    %v1011 = vadd.f32 %v1009, %v1010
    %v1012 = vmax.f32 %v1011, 0.0
    %1013 = vst [vmem:[#allocation3] sm:$0x3] %v1012
    %v1014 = vld [vmem:[#allocation3] sm:$0xf]
    %1016 = vrot.lane.b32.xlu0 %v1014, 126
    %v1017 = vpop.permute.xlu0 %1016
    %v1018 = vrot.slane %v1017, 2
    %v1019 = vsel %vm136, %v1017, %v1018
    %v1021 = vadd.f32 %v1012, %v1019
    %v1022 = vmul.f32 %v1021, 0.5
    %s1023 = scalar_lea.vmem [#allocation17], 6
    %1024 = vst [vmem:[%s1023] sm:$0x3] %v1022
    %s1025 = sld [smem:[#allocation12 + $0x30]]
    %v1026 = vstv %s1025
    %v1027 = vmul.f32 %v1026, %v421
    %s1028 = sld [smem:[#allocation12 + $0x31]]
    %v1029 = vstv %s1028
    %v1030 = vmul.f32 %v1029, %v422
    %1032 = vrot.lane.b32.xlu0 %v1030, 126
    %v1033 = vpop.permute.xlu0 %1032
    %v1034 = vrot.slane %v1033, 2
    %v1035 = vsel %vm136, %v1033, %v1034
    %v1037 = vadd.f32 %v1027, %v1035
    %s1038 = sld [smem:[#allocation12 + $0x32]]
    %v1039 = vstv %s1038
    %v1040 = vmul.f32 %v1039, %v422
    %1042 = vrot.lane.b32.xlu0 %v1040, 124
    %v1043 = vpop.permute.xlu0 %1042
    %v1044 = vrot.slane %v1043, 2
    %v1045 = vsel %vm453, %v1043, %v1044
    %v1047 = vadd.f32 %v1037, %v1045
    %s1048 = sld [smem:[#allocation12 + $0x33]]
    %v1049 = vstv %s1048
    %v1050 = vmul.f32 %v1049, %v423
    %v1051 = vadd.f32 %v1047, %v1050
    %s1052 = sld [smem:[#allocation12 + $0x34]]
    %v1053 = vstv %s1052
    %v1054 = vmul.f32 %v1053, %v424
    %1056 = vrot.lane.b32.xlu0 %v1054, 126
    %v1057 = vpop.permute.xlu0 %1056
    %v1058 = vrot.slane %v1057, 2
    %v1059 = vsel %vm136, %v1057, %v1058
    %v1061 = vadd.f32 %v1051, %v1059
    %s1062 = sld [smem:[#allocation12 + $0x35]]
    %v1063 = vstv %s1062
    %v1064 = vmul.f32 %v1063, %v424
    %1066 = vrot.lane.b32.xlu0 %v1064, 124
    %v1067 = vpop.permute.xlu0 %1066
    %v1068 = vrot.slane %v1067, 2
    %v1069 = vsel %vm453, %v1067, %v1068
    %v1071 = vadd.f32 %v1061, %v1069
    %s1072 = sld [smem:[#allocation12 + $0x36]]
    %v1073 = vstv %s1072
    %v1074 = vmul.f32 %v1073, %v425
    %v1075 = vadd.f32 %v1071, %v1074
    %s1076 = sld [smem:[#allocation12 + $0x37]]
    %v1077 = vstv %s1076
    %v1078 = vmul.f32 %v1077, %v426
    %1080 = vrot.lane.b32.xlu0 %v1078, 126
    %v1081 = vpop.permute.xlu0 %1080
    %v1082 = vrot.slane %v1081, 2
    %v1083 = vsel %vm136, %v1081, %v1082
    %v1085 = vadd.f32 %v1075, %v1083
    %s1086 = sld [smem:[#allocation12 + $0x38]]
    %v1087 = vstv %s1086
    %v1088 = vmul.f32 %v1087, %v426
    %1090 = vrot.lane.b32.xlu0 %v1088, 124
    %v1091 = vpop.permute.xlu0 %1090
    %v1092 = vrot.slane %v1091, 2
    %v1093 = vsel %vm453, %v1091, %v1092
    %v1095 = vadd.f32 %v1085, %v1093
    %s1096 = sld [smem:[#allocation12 + $0x39]]
    %v1097 = vstv %s1096
    %v1098 = vmul.f32 %v1097, %v427
    %v1099 = vadd.f32 %v1095, %v1098
    %s1100 = sld [smem:[#allocation12 + $0x3a]]
    %v1101 = vstv %s1100
    %v1102 = vmul.f32 %v1101, %v428
    %1104 = vrot.lane.b32.xlu0 %v1102, 126
    %v1105 = vpop.permute.xlu0 %1104
    %v1106 = vrot.slane %v1105, 2
    %v1107 = vsel %vm136, %v1105, %v1106
    %v1109 = vadd.f32 %v1099, %v1107
    %s1110 = sld [smem:[#allocation12 + $0x3b]]
    %v1111 = vstv %s1110
    %v1112 = vmul.f32 %v1111, %v428
    %1114 = vrot.lane.b32.xlu0 %v1112, 124
    %v1115 = vpop.permute.xlu0 %1114
    %v1116 = vrot.slane %v1115, 2
    %v1117 = vsel %vm453, %v1115, %v1116
    %v1119 = vadd.f32 %v1109, %v1117
    %v1120 = vsel %vm432, %v1119, 0.0
    %v1121 = vsel %vm141, %v1120, 0.0
    %1122 = vadd.xlane.f32.xlu0 %v1121
    %v1123 = vpop.xlane.xlu0 %1122
    %v1124 = vrot.slane %v1123, 4
    %v1125 = vadd.f32 %v1123, %v1124
    %v1126 = vrot.slane %v1125, 2
    %v1127 = vadd.f32 %v1125, %v1126
    %v1128 = vrot.slane %v1127, 1
    %v1129 = vadd.f32 %v1127, %v1128
    %s1130 = vtos %v1129
    %v1131 = vmul.f32 %v1120, %v1120
    %v1132 = vsel %vm141, %v1131, 0.0
    %1133 = vadd.xlane.f32.xlu0 %v1132
    %v1134 = vpop.xlane.xlu0 %1133
    %v1135 = vrot.slane %v1134, 4
    %v1136 = vadd.f32 %v1134, %v1135
    %v1137 = vrot.slane %v1136, 2
    %v1138 = vadd.f32 %v1136, %v1137
    %v1139 = vrot.slane %v1138, 1
    %v1140 = vadd.f32 %v1138, %v1139
    %s1141 = vtos %v1140
    %s1142 = smul.f32 %s1130, 0.008196721
    %s1143 = smul.f32 %s1141, 0.008196721
    %s1144 = smul.f32 %s1142, %s1142
    %s1145 = ssub.f32 %s1143, %s1144
    %s1146 = smax.f32 %s1145, 0.0
    %s1147 = sld [smem:[#allocation14 + $0x4]]
    %s1148 = sadd.f32 %s1146, 1e-05
    %v1149 = vstv %s1148
    %v1150 = vrsqrt.pop %v1149
    %s1151 = vtos %v1150
    %s1152 = smul.f32 %s1147, %s1151
    %s1153 = sld [smem:[#allocation15 + $0x4]]
    %s1154 = smul.f32 %s1142, %s1152
    %s1155 = ssub.f32 %s1153, %s1154
    %v1156 = vstv %s1152
    %v1157 = vmul.f32 %v1119, %v1156
    %v1158 = vstv %s1155
    %v1159 = vadd.f32 %v1157, %v1158
    %v1160 = vmax.f32 %v1159, 0.0
    %1161 = vst [vmem:[#allocation3] sm:$0x3] %v1160
    %v1162 = vld [vmem:[#allocation3] sm:$0xf]
    %1164 = vrot.lane.b32.xlu0 %v1162, 126
    %v1165 = vpop.permute.xlu0 %1164
    %v1166 = vrot.slane %v1165, 2
    %v1167 = vsel %vm136, %v1165, %v1166
    %v1169 = vadd.f32 %v1160, %v1167
    %v1170 = vmul.f32 %v1169, 0.5
    %s1171 = scalar_lea.vmem [#allocation17], 8
    %1172 = vst [vmem:[%s1171] sm:$0x3] %v1170
    %s1173 = sld [smem:[#allocation12 + $0x3c]]
    %v1174 = vstv %s1173
    %v1175 = vmul.f32 %v1174, %v421
    %s1176 = sld [smem:[#allocation12 + $0x3d]]
    %v1177 = vstv %s1176
    %v1178 = vmul.f32 %v1177, %v422
    %1180 = vrot.lane.b32.xlu0 %v1178, 126
    %v1181 = vpop.permute.xlu0 %1180
    %v1182 = vrot.slane %v1181, 2
    %v1183 = vsel %vm136, %v1181, %v1182
    %v1185 = vadd.f32 %v1175, %v1183
    %s1186 = sld [smem:[#allocation12 + $0x3e]]
    %v1187 = vstv %s1186
    %v1188 = vmul.f32 %v1187, %v422
    %1190 = vrot.lane.b32.xlu0 %v1188, 124
    %v1191 = vpop.permute.xlu0 %1190
    %v1192 = vrot.slane %v1191, 2
    %v1193 = vsel %vm453, %v1191, %v1192
    %v1195 = vadd.f32 %v1185, %v1193
    %s1196 = sld [smem:[#allocation12 + $0x3f]]
    %v1197 = vstv %s1196
    %v1198 = vmul.f32 %v1197, %v423
    %v1199 = vadd.f32 %v1195, %v1198
    %s1200 = sld [smem:[#allocation12 + $0x40]]
    %v1201 = vstv %s1200
    %v1202 = vmul.f32 %v1201, %v424
    %1204 = vrot.lane.b32.xlu0 %v1202, 126
    %v1205 = vpop.permute.xlu0 %1204
    %v1206 = vrot.slane %v1205, 2
    %v1207 = vsel %vm136, %v1205, %v1206
    %v1209 = vadd.f32 %v1199, %v1207
    %s1210 = sld [smem:[#allocation12 + $0x41]]
    %v1211 = vstv %s1210
    %v1212 = vmul.f32 %v1211, %v424
    %1214 = vrot.lane.b32.xlu0 %v1212, 124
    %v1215 = vpop.permute.xlu0 %1214
    %v1216 = vrot.slane %v1215, 2
    %v1217 = vsel %vm453, %v1215, %v1216
    %v1219 = vadd.f32 %v1209, %v1217
    %s1220 = sld [smem:[#allocation12 + $0x42]]
    %v1221 = vstv %s1220
    %v1222 = vmul.f32 %v1221, %v425
    %v1223 = vadd.f32 %v1219, %v1222
    %s1224 = sld [smem:[#allocation12 + $0x43]]
    %v1225 = vstv %s1224
    %v1226 = vmul.f32 %v1225, %v426
    %1228 = vrot.lane.b32.xlu0 %v1226, 126
    %v1229 = vpop.permute.xlu0 %1228
    %v1230 = vrot.slane %v1229, 2
    %v1231 = vsel %vm136, %v1229, %v1230
    %v1233 = vadd.f32 %v1223, %v1231
    %s1234 = sld [smem:[#allocation12 + $0x44]]
    %v1235 = vstv %s1234
    %v1236 = vmul.f32 %v1235, %v426
    %1238 = vrot.lane.b32.xlu0 %v1236, 124
    %v1239 = vpop.permute.xlu0 %1238
    %v1240 = vrot.slane %v1239, 2
    %v1241 = vsel %vm453, %v1239, %v1240
    %v1243 = vadd.f32 %v1233, %v1241
    %s1244 = sld [smem:[#allocation12 + $0x45]]
    %v1245 = vstv %s1244
    %v1246 = vmul.f32 %v1245, %v427
    %v1247 = vadd.f32 %v1243, %v1246
    %s1248 = sld [smem:[#allocation12 + $0x46]]
    %v1249 = vstv %s1248
    %v1250 = vmul.f32 %v1249, %v428
    %1252 = vrot.lane.b32.xlu0 %v1250, 126
    %v1253 = vpop.permute.xlu0 %1252
    %v1254 = vrot.slane %v1253, 2
    %v1255 = vsel %vm136, %v1253, %v1254
    %v1257 = vadd.f32 %v1247, %v1255
    %s1258 = sld [smem:[#allocation12 + $0x47]]
    %v1259 = vstv %s1258
    %v1260 = vmul.f32 %v1259, %v428
    %1262 = vrot.lane.b32.xlu0 %v1260, 124
    %v1263 = vpop.permute.xlu0 %1262
    %v1264 = vrot.slane %v1263, 2
    %v1265 = vsel %vm453, %v1263, %v1264
    %v1267 = vadd.f32 %v1257, %v1265
    %v1268 = vsel %vm432, %v1267, 0.0
    %v1269 = vsel %vm141, %v1268, 0.0
    %1270 = vadd.xlane.f32.xlu0 %v1269
    %v1271 = vpop.xlane.xlu0 %1270
    %v1272 = vrot.slane %v1271, 4
    %v1273 = vadd.f32 %v1271, %v1272
    %v1274 = vrot.slane %v1273, 2
    %v1275 = vadd.f32 %v1273, %v1274
    %v1276 = vrot.slane %v1275, 1
    %v1277 = vadd.f32 %v1275, %v1276
    %s1278 = vtos %v1277
    %v1279 = vmul.f32 %v1268, %v1268
    %v1280 = vsel %vm141, %v1279, 0.0
    %1281 = vadd.xlane.f32.xlu0 %v1280
    %v1282 = vpop.xlane.xlu0 %1281
    %v1283 = vrot.slane %v1282, 4
    %v1284 = vadd.f32 %v1282, %v1283
    %v1285 = vrot.slane %v1284, 2
    %v1286 = vadd.f32 %v1284, %v1285
    %v1287 = vrot.slane %v1286, 1
    %v1288 = vadd.f32 %v1286, %v1287
    %s1289 = vtos %v1288
    %s1290 = smul.f32 %s1278, 0.008196721
    %s1291 = smul.f32 %s1289, 0.008196721
    %s1292 = smul.f32 %s1290, %s1290
    %s1293 = ssub.f32 %s1291, %s1292
    %s1294 = smax.f32 %s1293, 0.0
    %s1295 = sld [smem:[#allocation14 + $0x5]]
    %s1296 = sadd.f32 %s1294, 1e-05
    %v1297 = vstv %s1296
    %v1298 = vrsqrt.pop %v1297
    %s1299 = vtos %v1298
    %s1300 = smul.f32 %s1295, %s1299
    %s1301 = sld [smem:[#allocation15 + $0x5]]
    %s1302 = smul.f32 %s1290, %s1300
    %s1303 = ssub.f32 %s1301, %s1302
    %v1304 = vstv %s1300
    %v1305 = vmul.f32 %v1267, %v1304
    %v1306 = vstv %s1303
    %v1307 = vadd.f32 %v1305, %v1306
    %v1308 = vmax.f32 %v1307, 0.0
    %1309 = vst [vmem:[#allocation3] sm:$0x3] %v1308
    %v1310 = vld [vmem:[#allocation3] sm:$0xf]
    %1312 = vrot.lane.b32.xlu0 %v1310, 126
    %v1313 = vpop.permute.xlu0 %1312
    %v1314 = vrot.slane %v1313, 2
    %v1315 = vsel %vm136, %v1313, %v1314
    %v1317 = vadd.f32 %v1308, %v1315
    %v1318 = vmul.f32 %v1317, 0.5
    %s1319 = scalar_lea.vmem [#allocation17], 10
    %1320 = vst [vmem:[%s1319] sm:$0x3] %v1318
    %s1321 = sld [smem:[#allocation12 + $0x48]]
    %v1322 = vstv %s1321
    %v1323 = vmul.f32 %v1322, %v421
    %s1324 = sld [smem:[#allocation12 + $0x49]]
    %v1325 = vstv %s1324
    %v1326 = vmul.f32 %v1325, %v422
    %1328 = vrot.lane.b32.xlu0 %v1326, 126
    %v1329 = vpop.permute.xlu0 %1328
    %v1330 = vrot.slane %v1329, 2
    %v1331 = vsel %vm136, %v1329, %v1330
    %v1333 = vadd.f32 %v1323, %v1331
    %s1334 = sld [smem:[#allocation12 + $0x4a]]
    %v1335 = vstv %s1334
    %v1336 = vmul.f32 %v1335, %v422
    %1338 = vrot.lane.b32.xlu0 %v1336, 124
    %v1339 = vpop.permute.xlu0 %1338
    %v1340 = vrot.slane %v1339, 2
    %v1341 = vsel %vm453, %v1339, %v1340
    %v1343 = vadd.f32 %v1333, %v1341
    %s1344 = sld [smem:[#allocation12 + $0x4b]]
    %v1345 = vstv %s1344
    %v1346 = vmul.f32 %v1345, %v423
    %v1347 = vadd.f32 %v1343, %v1346
    %s1348 = sld [smem:[#allocation12 + $0x4c]]
    %v1349 = vstv %s1348
    %v1350 = vmul.f32 %v1349, %v424
    %1352 = vrot.lane.b32.xlu0 %v1350, 126
    %v1353 = vpop.permute.xlu0 %1352
    %v1354 = vrot.slane %v1353, 2
    %v1355 = vsel %vm136, %v1353, %v1354
    %v1357 = vadd.f32 %v1347, %v1355
    %s1358 = sld [smem:[#allocation12 + $0x4d]]
    %v1359 = vstv %s1358
    %v1360 = vmul.f32 %v1359, %v424
    %1362 = vrot.lane.b32.xlu0 %v1360, 124
    %v1363 = vpop.permute.xlu0 %1362
    %v1364 = vrot.slane %v1363, 2
    %v1365 = vsel %vm453, %v1363, %v1364
    %v1367 = vadd.f32 %v1357, %v1365
    %s1368 = sld [smem:[#allocation12 + $0x4e]]
    %v1369 = vstv %s1368
    %v1370 = vmul.f32 %v1369, %v425
    %v1371 = vadd.f32 %v1367, %v1370
    %s1372 = sld [smem:[#allocation12 + $0x4f]]
    %v1373 = vstv %s1372
    %v1374 = vmul.f32 %v1373, %v426
    %1376 = vrot.lane.b32.xlu0 %v1374, 126
    %v1377 = vpop.permute.xlu0 %1376
    %v1378 = vrot.slane %v1377, 2
    %v1379 = vsel %vm136, %v1377, %v1378
    %v1381 = vadd.f32 %v1371, %v1379
    %s1382 = sld [smem:[#allocation12 + $0x50]]
    %v1383 = vstv %s1382
    %v1384 = vmul.f32 %v1383, %v426
    %1386 = vrot.lane.b32.xlu0 %v1384, 124
    %v1387 = vpop.permute.xlu0 %1386
    %v1388 = vrot.slane %v1387, 2
    %v1389 = vsel %vm453, %v1387, %v1388
    %v1391 = vadd.f32 %v1381, %v1389
    %s1392 = sld [smem:[#allocation12 + $0x51]]
    %v1393 = vstv %s1392
    %v1394 = vmul.f32 %v1393, %v427
    %v1395 = vadd.f32 %v1391, %v1394
    %s1396 = sld [smem:[#allocation12 + $0x52]]
    %v1397 = vstv %s1396
    %v1398 = vmul.f32 %v1397, %v428
    %1400 = vrot.lane.b32.xlu0 %v1398, 126
    %v1401 = vpop.permute.xlu0 %1400
    %v1402 = vrot.slane %v1401, 2
    %v1403 = vsel %vm136, %v1401, %v1402
    %v1405 = vadd.f32 %v1395, %v1403
    %s1406 = sld [smem:[#allocation12 + $0x53]]
    %v1407 = vstv %s1406
    %v1408 = vmul.f32 %v1407, %v428
    %1410 = vrot.lane.b32.xlu0 %v1408, 124
    %v1411 = vpop.permute.xlu0 %1410
    %v1412 = vrot.slane %v1411, 2
    %v1413 = vsel %vm453, %v1411, %v1412
    %v1415 = vadd.f32 %v1405, %v1413
    %v1416 = vsel %vm432, %v1415, 0.0
    %v1417 = vsel %vm141, %v1416, 0.0
    %1418 = vadd.xlane.f32.xlu0 %v1417
    %v1419 = vpop.xlane.xlu0 %1418
    %v1420 = vrot.slane %v1419, 4
    %v1421 = vadd.f32 %v1419, %v1420
    %v1422 = vrot.slane %v1421, 2
    %v1423 = vadd.f32 %v1421, %v1422
    %v1424 = vrot.slane %v1423, 1
    %v1425 = vadd.f32 %v1423, %v1424
    %s1426 = vtos %v1425
    %v1427 = vmul.f32 %v1416, %v1416
    %v1428 = vsel %vm141, %v1427, 0.0
    %1429 = vadd.xlane.f32.xlu0 %v1428
    %v1430 = vpop.xlane.xlu0 %1429
    %v1431 = vrot.slane %v1430, 4
    %v1432 = vadd.f32 %v1430, %v1431
    %v1433 = vrot.slane %v1432, 2
    %v1434 = vadd.f32 %v1432, %v1433
    %v1435 = vrot.slane %v1434, 1
    %v1436 = vadd.f32 %v1434, %v1435
    %s1437 = vtos %v1436
    %s1438 = smul.f32 %s1426, 0.008196721
    %s1439 = smul.f32 %s1437, 0.008196721
    %s1440 = smul.f32 %s1438, %s1438
    %s1441 = ssub.f32 %s1439, %s1440
    %s1442 = smax.f32 %s1441, 0.0
    %s1443 = sld [smem:[#allocation14 + $0x6]]
    %s1444 = sadd.f32 %s1442, 1e-05
    %v1445 = vstv %s1444
    %v1446 = vrsqrt.pop %v1445
    %s1447 = vtos %v1446
    %s1448 = smul.f32 %s1443, %s1447
    %s1449 = sld [smem:[#allocation15 + $0x6]]
    %s1450 = smul.f32 %s1438, %s1448
    %s1451 = ssub.f32 %s1449, %s1450
    %v1452 = vstv %s1448
    %v1453 = vmul.f32 %v1415, %v1452
    %v1454 = vstv %s1451
    %v1455 = vadd.f32 %v1453, %v1454
    %v1456 = vmax.f32 %v1455, 0.0
    %1457 = vst [vmem:[#allocation3] sm:$0x3] %v1456
    %v1458 = vld [vmem:[#allocation3] sm:$0xf]
    %1460 = vrot.lane.b32.xlu0 %v1458, 126
    %v1461 = vpop.permute.xlu0 %1460
    %v1462 = vrot.slane %v1461, 2
    %v1463 = vsel %vm136, %v1461, %v1462
    %v1465 = vadd.f32 %v1456, %v1463
    %v1466 = vmul.f32 %v1465, 0.5
    %s1467 = scalar_lea.vmem [#allocation17], 12
    %1468 = vst [vmem:[%s1467] sm:$0x3] %v1466
    %s1469 = sld [smem:[#allocation12 + $0x54]]
    %v1470 = vstv %s1469
    %v1471 = vmul.f32 %v1470, %v421
    %s1472 = sld [smem:[#allocation12 + $0x55]]
    %v1473 = vstv %s1472
    %v1474 = vmul.f32 %v1473, %v422
    %1476 = vrot.lane.b32.xlu0 %v1474, 126
    %v1477 = vpop.permute.xlu0 %1476
    %v1478 = vrot.slane %v1477, 2
    %v1479 = vsel %vm136, %v1477, %v1478
    %v1481 = vadd.f32 %v1471, %v1479
    %s1482 = sld [smem:[#allocation12 + $0x56]]
    %v1483 = vstv %s1482
    %v1484 = vmul.f32 %v1483, %v422
    %1486 = vrot.lane.b32.xlu0 %v1484, 124
    %v1487 = vpop.permute.xlu0 %1486
    %v1488 = vrot.slane %v1487, 2
    %v1489 = vsel %vm453, %v1487, %v1488
    %v1491 = vadd.f32 %v1481, %v1489
    %s1492 = sld [smem:[#allocation12 + $0x57]]
    %v1493 = vstv %s1492
    %v1494 = vmul.f32 %v1493, %v423
    %v1495 = vadd.f32 %v1491, %v1494
    %s1496 = sld [smem:[#allocation12 + $0x58]]
    %v1497 = vstv %s1496
    %v1498 = vmul.f32 %v1497, %v424
    %1500 = vrot.lane.b32.xlu0 %v1498, 126
    %v1501 = vpop.permute.xlu0 %1500
    %v1502 = vrot.slane %v1501, 2
    %v1503 = vsel %vm136, %v1501, %v1502
    %v1505 = vadd.f32 %v1495, %v1503
    %s1506 = sld [smem:[#allocation12 + $0x59]]
    %v1507 = vstv %s1506
    %v1508 = vmul.f32 %v1507, %v424
    %1510 = vrot.lane.b32.xlu0 %v1508, 124
    %v1511 = vpop.permute.xlu0 %1510
    %v1512 = vrot.slane %v1511, 2
    %v1513 = vsel %vm453, %v1511, %v1512
    %v1515 = vadd.f32 %v1505, %v1513
    %s1516 = sld [smem:[#allocation12 + $0x5a]]
    %v1517 = vstv %s1516
    %v1518 = vmul.f32 %v1517, %v425
    %v1519 = vadd.f32 %v1515, %v1518
    %s1520 = sld [smem:[#allocation12 + $0x5b]]
    %v1521 = vstv %s1520
    %v1522 = vmul.f32 %v1521, %v426
    %1524 = vrot.lane.b32.xlu0 %v1522, 126
    %v1525 = vpop.permute.xlu0 %1524
    %v1526 = vrot.slane %v1525, 2
    %v1527 = vsel %vm136, %v1525, %v1526
    %v1529 = vadd.f32 %v1519, %v1527
    %s1530 = sld [smem:[#allocation12 + $0x5c]]
    %v1531 = vstv %s1530
    %v1532 = vmul.f32 %v1531, %v426
    %1534 = vrot.lane.b32.xlu0 %v1532, 124
    %v1535 = vpop.permute.xlu0 %1534
    %v1536 = vrot.slane %v1535, 2
    %v1537 = vsel %vm453, %v1535, %v1536
    %v1539 = vadd.f32 %v1529, %v1537
    %s1540 = sld [smem:[#allocation12 + $0x5d]]
    %v1541 = vstv %s1540
    %v1542 = vmul.f32 %v1541, %v427
    %v1543 = vadd.f32 %v1539, %v1542
    %s1544 = sld [smem:[#allocation12 + $0x5e]]
    %v1545 = vstv %s1544
    %v1546 = vmul.f32 %v1545, %v428
    %1548 = vrot.lane.b32.xlu0 %v1546, 126
    %v1549 = vpop.permute.xlu0 %1548
    %v1550 = vrot.slane %v1549, 2
    %v1551 = vsel %vm136, %v1549, %v1550
    %v1553 = vadd.f32 %v1543, %v1551
    %s1554 = sld [smem:[#allocation12 + $0x5f]]
    %v1555 = vstv %s1554
    %v1556 = vmul.f32 %v1555, %v428
    %1558 = vrot.lane.b32.xlu0 %v1556, 124
    %v1559 = vpop.permute.xlu0 %1558
    %v1560 = vrot.slane %v1559, 2
    %v1561 = vsel %vm453, %v1559, %v1560
    %v1563 = vadd.f32 %v1553, %v1561
    %v1564 = vsel %vm432, %v1563, 0.0
    %v1565 = vsel %vm141, %v1564, 0.0
    %1566 = vadd.xlane.f32.xlu0 %v1565
    %v1567 = vpop.xlane.xlu0 %1566
    %v1568 = vrot.slane %v1567, 4
    %v1569 = vadd.f32 %v1567, %v1568
    %v1570 = vrot.slane %v1569, 2
    %v1571 = vadd.f32 %v1569, %v1570
    %v1572 = vrot.slane %v1571, 1
    %v1573 = vadd.f32 %v1571, %v1572
    %s1574 = vtos %v1573
    %v1575 = vmul.f32 %v1564, %v1564
    %v1576 = vsel %vm141, %v1575, 0.0
    %1577 = vadd.xlane.f32.xlu0 %v1576
    %v1578 = vpop.xlane.xlu0 %1577
    %v1579 = vrot.slane %v1578, 4
    %v1580 = vadd.f32 %v1578, %v1579
    %v1581 = vrot.slane %v1580, 2
    %v1582 = vadd.f32 %v1580, %v1581
    %v1583 = vrot.slane %v1582, 1
    %v1584 = vadd.f32 %v1582, %v1583
    %s1585 = vtos %v1584
    %s1586 = smul.f32 %s1574, 0.008196721
    %s1587 = smul.f32 %s1585, 0.008196721
    %s1588 = smul.f32 %s1586, %s1586
    %s1589 = ssub.f32 %s1587, %s1588
    %s1590 = smax.f32 %s1589, 0.0
    %s1591 = sld [smem:[#allocation14 + $0x7]]
    %s1592 = sadd.f32 %s1590, 1e-05
    %v1593 = vstv %s1592
    %v1594 = vrsqrt.pop %v1593
    %s1595 = vtos %v1594
    %s1596 = smul.f32 %s1591, %s1595
    %s1597 = sld [smem:[#allocation15 + $0x7]]
    %s1598 = smul.f32 %s1586, %s1596
    %s1599 = ssub.f32 %s1597, %s1598
    %v1600 = vstv %s1596
    %v1601 = vmul.f32 %v1563, %v1600
    %v1602 = vstv %s1599
    %v1603 = vadd.f32 %v1601, %v1602
    %v1604 = vmax.f32 %v1603, 0.0
    %1605 = vst [vmem:[#allocation3] sm:$0x3] %v1604
    %v1606 = vld [vmem:[#allocation3] sm:$0xf]
    %1608 = vrot.lane.b32.xlu0 %v1606, 126
    %v1609 = vpop.permute.xlu0 %1608
    %v1610 = vrot.slane %v1609, 2
    %v1611 = vsel %vm136, %v1609, %v1610
    %v1613 = vadd.f32 %v1604, %v1611
    %v1614 = vmul.f32 %v1613, 0.5
    %s1615 = scalar_lea.vmem [#allocation17], 14
    %1616 = vst [vmem:[%s1615] sm:$0x3] %v1614
    // Predicated region
    $region58: #{tpu_custom_call.1} parent=1 // pred_check
      _
    $region59: #{tpu_custom_call.1} parent=1 // pred_check_branch
      %1618 = sbr.rel (0) target = $region61
    $region60: #{tpu_custom_call.1} parent=1 // pred_region
      %s1620 = ssub.s32 256, 256
      %1621 = vsyncadd [#allocation6], %s1620
      %s1622 = sshll.u32 [#allocation17], 4
      %s1623 = int_to_ptr.vmem [resolvable:$true] %s1622
      %1628 = dma.vmem_to_hbm [thread:$0]  %s1623, 256, %s7, [#allocation6], 32, 32, 2
    $region61: #{tpu_custom_call.1} parent=1 // pred_fallthru
      _
    // Predicated region
    $region62: #{tpu_custom_call.1} parent=1 // pred_check
      _
    $region63: #{tpu_custom_call.1} parent=1 // pred_check_branch
      %1630 = sbr.rel (0) target = $region65
    $region64: #{tpu_custom_call.1} parent=1 // pred_region
      %1631 = dma.done [#allocation6], 256
    $region65: #{tpu_custom_call.1} parent=1 // pred_fallthru
      _
    %1632 = vsyncpa [#allocation5], 1
    %1633 = vsyncpa [#allocation6], 1
    %1634 = vsyncpa [#allocation7], 1
    %1635 = vsyncpa [#allocation10], 1
    %1636 = vsyncpa [#allocation13], 1
    %1637 = vsyncpa [#allocation16], 1

</llo_original>
